<compile_context>
chip_gen: v6e
topology: v6e:2x2x1
jax: 0.10.0
libtpu: 0.0.40
codegen_flags: <defaults>
</compile_context>

<pallas_src>
import functools

import jax
import jax.numpy as jnp
from jax import lax
from jax.experimental import pallas as pl
from jax.experimental.pallas import tpu as pltpu


def _visual_dict_kernel(xt_ref, embed_ref, embed_t_ref, e_sq_ref,
                        qt_ref, idx_ref, *, topk, inv_temperature):
    xt = xt_ref[...].astype(jnp.float32)        # [D, TN]  tokens on lanes
    e = embed_ref[...].astype(jnp.float32)      # [K, D]
    et = embed_t_ref[...].astype(jnp.float32)   # [D, K]
    e_sq = e_sq_ref[...]                        # [K, 1]   (precomputed f32)

    tn = xt.shape[1]
    k = e.shape[0]

    # ||x_n||^2: sublane reduction over D (mostly VPU vreg combines).
    x_sq = jnp.sum(xt * xt, axis=0, keepdims=True)                      # [1, TN]
    # <e_k, x_n>: MXU matmul; codebook block is constant across the grid.
    xe = jnp.dot(e, xt, preferred_element_type=jnp.float32)             # [K, TN]
    dist = x_sq + e_sq - 2.0 * xe                                       # [K, TN]

    # Codeword id along the sublane axis.
    iota_k = lax.broadcasted_iota(jnp.int32, (k, tn), 0)                # [K, TN]

    # Iterative top-k smallest distances (topk tiny & static -> unrolled).
    # Sublane-axis reductions keep most of this on the VPU instead of the XLU.
    d_work = dist
    topk_d = []
    topk_idx = []
    for _ in range(topk):
        mv = jnp.min(d_work, axis=0, keepdims=True)                     # [1, TN]
        is_min = d_work == mv
        # Lowest index among equal minima (matches top_k tie-breaking).
        idx = jnp.min(jnp.where(is_min, iota_k, k), axis=0, keepdims=True)
        topk_d.append(mv)
        topk_idx.append(idx)
        d_work = jnp.where(iota_k == idx, jnp.inf, d_work)

    # softmax(-topk_d / T) over the k selected entries, stabilized with
    # topk_d[0] (the smallest distance => largest logit => exp(0) == 1).
    exps = [jnp.ones((1, tn), jnp.float32)]
    for j in range(1, topk):
        exps.append(jnp.exp((topk_d[0] - topk_d[j]) * inv_temperature))
    denom = exps[0]
    for j in range(1, topk):
        denom = denom + exps[j]
    # Exact reciprocal: pl.reciprocal(approx=True) saves a few VPU ops but its
    # ~2^-12 relative error scales the whole quantize output past 1e-4.
    inv_denom = 1.0 / denom

    # Scatter the softmax weights into dense encodings^T [K, TN].
    enc = jnp.zeros((k, tn), jnp.float32)
    for j in range(topk):
        w_j = exps[j] * inv_denom                                       # [1, TN]
        enc = enc + jnp.where(iota_k == topk_idx[j], w_j, 0.0)

    # quantize^T = embed^T @ encodings^T   (second MXU matmul).
    qt = jnp.dot(et, enc, preferred_element_type=jnp.float32)           # [D, TN]

    qt_ref[...] = qt.astype(qt_ref.dtype)
    # Nearest codeword == argmax(encodings).  Lane-dense (1, 1, tile_n) store.
    idx_ref[...] = topk_idx[0].astype(jnp.int32).reshape(1, 1, tn)


def visual_dict_forward(inputs_flatten, embed, *, topk=5, temperature=1.0,
                        tile_n=256):
    """Eval-mode forward of VisualDict. Returns (quantize [N,D], indices [N,1])."""
    n, d = inputs_flatten.shape
    k, d2 = embed.shape
    assert d == d2
    assert topk <= k, "topk must not exceed the codebook size"
    assert tile_n % 128 == 0, "tile_n must be a multiple of 128 lanes"

    num_tiles = pl.cdiv(n, tile_n)
    n_pad = num_tiles * tile_n

    # Codebook-constant work hoisted out of the grid loop (perf feedback).
    embed_f32 = embed.astype(jnp.float32)
    e_sq = jnp.sum(embed_f32 * embed_f32, axis=1, keepdims=True)        # [K, 1]
    embed_t = embed.T                                                   # [D, K]

    # Tokens go on the lane axis: transpose (and pad) wrapper-side so both
    # kernel outputs are lane-dense slabs (layout plumbing, not compute).
    x_t = inputs_flatten.T                                              # [D, N]
    if n_pad != n:
        x_t = jnp.pad(x_t, ((0, 0), (0, n_pad - n)))

    kernel = functools.partial(_visual_dict_kernel, topk=topk,
                               inv_temperature=1.0 / float(temperature))

    q_t, idx_tiles = pl.pallas_call(
        kernel,
        out_shape=(
            jax.ShapeDtypeStruct((d, n_pad), inputs_flatten.dtype),     # quantize^T
            jax.ShapeDtypeStruct((num_tiles, 1, tile_n), jnp.int32),    # indices
        ),
        grid_spec=pltpu.PrefetchScalarGridSpec(
            num_scalar_prefetch=0,
            grid=(num_tiles,),
            in_specs=[
                pl.BlockSpec((d, tile_n), lambda i: (0, i)),  # x^T tile
                pl.BlockSpec((k, d), lambda i: (0, 0)),       # codebook (const)
                pl.BlockSpec((d, k), lambda i: (0, 0)),       # codebook^T (const)
                pl.BlockSpec((k, 1), lambda i: (0, 0)),       # ||e||^2   (const)
            ],
            out_specs=(
                pl.BlockSpec((d, tile_n), lambda i: (0, i)),
                pl.BlockSpec((1, 1, tile_n), lambda i: (i, 0, 0)),
            ),
        ),
        compiler_params=pltpu.CompilerParams(
            # Row axis is embarrassingly parallel -> lets v7x shard across TCs.
            dimension_semantics=("parallel",),
            # Working set (few 100 KiB) fits every generation incl. v7x 64 MiB.
            vmem_limit_bytes=32 * 1024 * 1024,
        ),
    )(x_t, embed, embed_t, e_sq)

    quantize = q_t.T[:n]                                                # [N, D]
    indices = idx_tiles.reshape(n_pad, 1)[:n]                           # [N, 1]
    return quantize, indices


def _reference_forward(x, embed, topk=5, temperature=1.0):
    """Pure-JAX reference mirroring the PyTorch forward (eval mode)."""
    dist = (
        jnp.sum(x**2, axis=1, keepdims=True)
        + jnp.sum(embed**2, axis=1)
        - 2.0 * x @ embed.T
    )
    neg_topk_vals, topk_idx = jax.lax.top_k(-dist, topk)
    topk_d = -neg_topk_vals
    w = jax.nn.softmax(-topk_d / temperature, axis=1)
    enc = jnp.zeros_like(dist)
    enc = jax.vmap(lambda e_row, i_row, w_row: e_row.at[i_row].set(w_row))(
        enc, topk_idx, w
    )
    idx = jnp.argmax(enc, axis=1)[:, None].astype(jnp.int32)
    q = enc @ embed
    return q, idx


if __name__ == "__main__":
    # Shapes consistent with the module: codebook K=128, token_dim D=32,
    # N=512 flattened input vectors (2 grid steps at tile_n=256).
    NUM_TOKENS, TOKEN_DIM, N = 128, 32, 512

    key = jax.random.PRNGKey(0)
    k_embed, k_x = jax.random.split(key)
    # Deterministic parameter init (matches nn.init.normal_ on `embed`).
    embed = jax.random.normal(k_embed, (NUM_TOKENS, TOKEN_DIM), dtype=jnp.float32)
    x = jax.random.normal(k_x, (N, TOKEN_DIM), dtype=jnp.float32)

    quantize, indices = visual_dict_forward(x, embed, topk=5, temperature=1.0)
    quantize = jax.block_until_ready(quantize)
    indices = jax.block_until_ready(indices)

    q_ref, idx_ref = _reference_forward(x, embed)
    assert quantize.shape == (N, TOKEN_DIM) and indices.shape == (N, 1)
    assert jnp.allclose(quantize, q_ref, atol=1e-4, rtol=1e-4)
    assert jnp.array_equal(indices, idx_ref)

    print("KERNEL_OK")
</pallas_src>

<mosaic_0001>
module attributes {stable_mosaic.version = 11 : i64} {
  func.func @_visual_dict_kernel(%arg0: i32, %arg1: memref<32x256xf32, #tpu.memory_space<vmem>>, %arg2: memref<128x32xf32, #tpu.memory_space<vmem>>, %arg3: memref<32x128xf32, #tpu.memory_space<vmem>>, %arg4: memref<128x1xf32, #tpu.memory_space<vmem>>, %arg5: memref<32x256xf32, #tpu.memory_space<vmem>>, %arg6: memref<1x1x256xi32, #tpu.memory_space<vmem>>) attributes {dimension_semantics = [#tpu.dimension_semantics<parallel>], iteration_bounds = array<i64: 2>, scalar_prefetch = 0 : i64, scratch_operands = 0 : i64, tpu.core_type = #tpu.core_type<tc>, window_params = [{transform_indices = @transform_0, window_bounds = array<i64: 32, 256>}, {pipeline_mode = #tpu.pipeline_mode<synchronous>, transform_indices = @transform_1, window_bounds = array<i64: 128, 32>}, {pipeline_mode = #tpu.pipeline_mode<synchronous>, transform_indices = @transform_2, window_bounds = array<i64: 32, 128>}, {pipeline_mode = #tpu.pipeline_mode<synchronous>, transform_indices = @transform_3, window_bounds = array<i64: 128, 1>}, {transform_indices = @transform_4, window_bounds = array<i64: 32, 256>}, {transform_indices = @transform_5, window_bounds = array<i64: 1, 1, 256>}]} {
    %c0 = arith.constant 0 : index
    %c0_0 = arith.constant 0 : index
    %0 = vector.load %arg1[%c0, %c0_0] : memref<32x256xf32, #tpu.memory_space<vmem>>, vector<32x256xf32>
    %c0_1 = arith.constant 0 : index
    %c0_2 = arith.constant 0 : index
    %1 = vector.load %arg2[%c0_1, %c0_2] : memref<128x32xf32, #tpu.memory_space<vmem>>, vector<128x32xf32>
    %c0_3 = arith.constant 0 : index
    %c0_4 = arith.constant 0 : index
    %2 = vector.load %arg3[%c0_3, %c0_4] : memref<32x128xf32, #tpu.memory_space<vmem>>, vector<32x128xf32>
    %c0_5 = arith.constant 0 : index
    %c0_6 = arith.constant 0 : index
    %3 = vector.load %arg4[%c0_5, %c0_6] : memref<128x1xf32, #tpu.memory_space<vmem>>, vector<128x1xf32>
    %4 = arith.mulf %0, %0 : vector<32x256xf32>
    %cst = arith.constant dense<0.000000e+00> : vector<256xf32>
    %5 = vector.multi_reduction <add>, %4, %cst [0] : vector<32x256xf32> to vector<256xf32>
    %6 = vector.shape_cast %5 : vector<256xf32> to vector<1x256xf32>
    %cst_7 = arith.constant dense<0.000000e+00> : vector<128x256xf32>
    %7 = tpu.matmul %1, %0, %cst_7 {dimension_numbers = #tpu.dot_dimension_numbers<[1], [0], [0], [1], [0, 0, 1, 1], [], []>} : vector<128x32xf32>, vector<32x256xf32>, vector<128x256xf32> -> vector<128x256xf32>
    %8 = vector.broadcast %6 : vector<1x256xf32> to vector<128x256xf32>
    %9 = vector.broadcast %3 : vector<128x1xf32> to vector<128x256xf32>
    %10 = arith.addf %8, %9 : vector<128x256xf32>
    %cst_8 = arith.constant 2.000000e+00 : f32
    %11 = vector.broadcast %cst_8 : f32 to vector<128x256xf32>
    %12 = arith.mulf %11, %7 : vector<128x256xf32>
    %13 = arith.subf %10, %12 : vector<128x256xf32>
    %14 = tpu.iota {dimensions = array<i32: 0>} : vector<128x256xi32>
    %cst_9 = arith.constant dense<0x7F800000> : vector<256xf32>
    %15 = vector.multi_reduction <minimumf>, %13, %cst_9 [0] : vector<128x256xf32> to vector<256xf32>
    %16 = vector.shape_cast %15 : vector<256xf32> to vector<1x256xf32>
    %17 = vector.broadcast %16 : vector<1x256xf32> to vector<128x256xf32>
    %18 = arith.cmpf oeq, %13, %17 : vector<128x256xf32>
    %c128_i32 = arith.constant 128 : i32
    %19 = vector.broadcast %c128_i32 : i32 to vector<128x256xi32>
    %20 = arith.select %18, %14, %19 : vector<128x256xi1>, vector<128x256xi32>
    %cst_10 = arith.constant dense<2147483647> : vector<256xi32>
    %21 = vector.multi_reduction <minsi>, %20, %cst_10 [0] : vector<128x256xi32> to vector<256xi32>
    %22 = vector.shape_cast %21 : vector<256xi32> to vector<1x256xi32>
    %23 = vector.broadcast %22 : vector<1x256xi32> to vector<128x256xi32>
    %24 = arith.cmpi eq, %14, %23 : vector<128x256xi32>
    %cst_11 = arith.constant 0x7F800000 : f32
    %25 = vector.broadcast %cst_11 : f32 to vector<128x256xf32>
    %26 = arith.select %24, %25, %13 : vector<128x256xi1>, vector<128x256xf32>
    %cst_12 = arith.constant dense<0x7F800000> : vector<256xf32>
    %27 = vector.multi_reduction <minimumf>, %26, %cst_12 [0] : vector<128x256xf32> to vector<256xf32>
    %28 = vector.shape_cast %27 : vector<256xf32> to vector<1x256xf32>
    %29 = vector.broadcast %28 : vector<1x256xf32> to vector<128x256xf32>
    %30 = arith.cmpf oeq, %26, %29 : vector<128x256xf32>
    %c128_i32_13 = arith.constant 128 : i32
    %31 = vector.broadcast %c128_i32_13 : i32 to vector<128x256xi32>
    %32 = arith.select %30, %14, %31 : vector<128x256xi1>, vector<128x256xi32>
    %cst_14 = arith.constant dense<2147483647> : vector<256xi32>
    %33 = vector.multi_reduction <minsi>, %32, %cst_14 [0] : vector<128x256xi32> to vector<256xi32>
    %34 = vector.shape_cast %33 : vector<256xi32> to vector<1x256xi32>
    %35 = vector.broadcast %34 : vector<1x256xi32> to vector<128x256xi32>
    %36 = arith.cmpi eq, %14, %35 : vector<128x256xi32>
    %cst_15 = arith.constant 0x7F800000 : f32
    %37 = vector.broadcast %cst_15 : f32 to vector<128x256xf32>
    %38 = arith.select %36, %37, %26 : vector<128x256xi1>, vector<128x256xf32>
    %cst_16 = arith.constant dense<0x7F800000> : vector<256xf32>
    %39 = vector.multi_reduction <minimumf>, %38, %cst_16 [0] : vector<128x256xf32> to vector<256xf32>
    %40 = vector.shape_cast %39 : vector<256xf32> to vector<1x256xf32>
    %41 = vector.broadcast %40 : vector<1x256xf32> to vector<128x256xf32>
    %42 = arith.cmpf oeq, %38, %41 : vector<128x256xf32>
    %c128_i32_17 = arith.constant 128 : i32
    %43 = vector.broadcast %c128_i32_17 : i32 to vector<128x256xi32>
    %44 = arith.select %42, %14, %43 : vector<128x256xi1>, vector<128x256xi32>
    %cst_18 = arith.constant dense<2147483647> : vector<256xi32>
    %45 = vector.multi_reduction <minsi>, %44, %cst_18 [0] : vector<128x256xi32> to vector<256xi32>
    %46 = vector.shape_cast %45 : vector<256xi32> to vector<1x256xi32>
    %47 = vector.broadcast %46 : vector<1x256xi32> to vector<128x256xi32>
    %48 = arith.cmpi eq, %14, %47 : vector<128x256xi32>
    %cst_19 = arith.constant 0x7F800000 : f32
    %49 = vector.broadcast %cst_19 : f32 to vector<128x256xf32>
    %50 = arith.select %48, %49, %38 : vector<128x256xi1>, vector<128x256xf32>
    %cst_20 = arith.constant dense<0x7F800000> : vector<256xf32>
    %51 = vector.multi_reduction <minimumf>, %50, %cst_20 [0] : vector<128x256xf32> to vector<256xf32>
    %52 = vector.shape_cast %51 : vector<256xf32> to vector<1x256xf32>
    %53 = vector.broadcast %52 : vector<1x256xf32> to vector<128x256xf32>
    %54 = arith.cmpf oeq, %50, %53 : vector<128x256xf32>
    %c128_i32_21 = arith.constant 128 : i32
    %55 = vector.broadcast %c128_i32_21 : i32 to vector<128x256xi32>
    %56 = arith.select %54, %14, %55 : vector<128x256xi1>, vector<128x256xi32>
    %cst_22 = arith.constant dense<2147483647> : vector<256xi32>
    %57 = vector.multi_reduction <minsi>, %56, %cst_22 [0] : vector<128x256xi32> to vector<256xi32>
    %58 = vector.shape_cast %57 : vector<256xi32> to vector<1x256xi32>
    %59 = vector.broadcast %58 : vector<1x256xi32> to vector<128x256xi32>
    %60 = arith.cmpi eq, %14, %59 : vector<128x256xi32>
    %cst_23 = arith.constant 0x7F800000 : f32
    %61 = vector.broadcast %cst_23 : f32 to vector<128x256xf32>
    %62 = arith.select %60, %61, %50 : vector<128x256xi1>, vector<128x256xf32>
    %cst_24 = arith.constant dense<0x7F800000> : vector<256xf32>
    %63 = vector.multi_reduction <minimumf>, %62, %cst_24 [0] : vector<128x256xf32> to vector<256xf32>
    %64 = vector.shape_cast %63 : vector<256xf32> to vector<1x256xf32>
    %65 = vector.broadcast %64 : vector<1x256xf32> to vector<128x256xf32>
    %66 = arith.cmpf oeq, %62, %65 : vector<128x256xf32>
    %c128_i32_25 = arith.constant 128 : i32
    %67 = vector.broadcast %c128_i32_25 : i32 to vector<128x256xi32>
    %68 = arith.select %66, %14, %67 : vector<128x256xi1>, vector<128x256xi32>
    %cst_26 = arith.constant dense<2147483647> : vector<256xi32>
    %69 = vector.multi_reduction <minsi>, %68, %cst_26 [0] : vector<128x256xi32> to vector<256xi32>
    %70 = vector.shape_cast %69 : vector<256xi32> to vector<1x256xi32>
    %cst_27 = arith.constant 1.000000e+00 : f32
    %71 = vector.broadcast %cst_27 : f32 to vector<1x256xf32>
    %72 = arith.subf %16, %28 : vector<1x256xf32>
    %cst_28 = arith.constant 1.000000e+00 : f32
    %73 = vector.broadcast %cst_28 : f32 to vector<1x256xf32>
    %74 = arith.mulf %72, %73 : vector<1x256xf32>
    %75 = math.exp %74 : vector<1x256xf32>
    %76 = arith.subf %16, %40 : vector<1x256xf32>
    %cst_29 = arith.constant 1.000000e+00 : f32
    %77 = vector.broadcast %cst_29 : f32 to vector<1x256xf32>
    %78 = arith.mulf %76, %77 : vector<1x256xf32>
    %79 = math.exp %78 : vector<1x256xf32>
    %80 = arith.subf %16, %52 : vector<1x256xf32>
    %cst_30 = arith.constant 1.000000e+00 : f32
    %81 = vector.broadcast %cst_30 : f32 to vector<1x256xf32>
    %82 = arith.mulf %80, %81 : vector<1x256xf32>
    %83 = math.exp %82 : vector<1x256xf32>
    %84 = arith.subf %16, %64 : vector<1x256xf32>
    %cst_31 = arith.constant 1.000000e+00 : f32
    %85 = vector.broadcast %cst_31 : f32 to vector<1x256xf32>
    %86 = arith.mulf %84, %85 : vector<1x256xf32>
    %87 = math.exp %86 : vector<1x256xf32>
    %88 = arith.addf %71, %75 : vector<1x256xf32>
    %89 = arith.addf %88, %79 : vector<1x256xf32>
    %90 = arith.addf %89, %83 : vector<1x256xf32>
    %91 = arith.addf %90, %87 : vector<1x256xf32>
    %cst_32 = arith.constant 1.000000e+00 : f32
    %92 = vector.broadcast %cst_32 : f32 to vector<1x256xf32>
    %93 = arith.divf %92, %91 : vector<1x256xf32>
    %cst_33 = arith.constant 0.000000e+00 : f32
    %94 = vector.broadcast %cst_33 : f32 to vector<128x256xf32>
    %95 = arith.mulf %71, %93 : vector<1x256xf32>
    %96 = vector.broadcast %22 : vector<1x256xi32> to vector<128x256xi32>
    %97 = arith.cmpi eq, %14, %96 : vector<128x256xi32>
    %cst_34 = arith.constant 0.000000e+00 : f32
    %98 = vector.shape_cast %95 : vector<1x256xf32> to vector<1x256xf32>
    %99 = vector.broadcast %98 : vector<1x256xf32> to vector<128x256xf32>
    %100 = vector.broadcast %cst_34 : f32 to vector<128x256xf32>
    %101 = arith.select %97, %99, %100 : vector<128x256xi1>, vector<128x256xf32>
    %102 = arith.addf %94, %101 : vector<128x256xf32>
    %103 = arith.mulf %75, %93 : vector<1x256xf32>
    %104 = vector.broadcast %34 : vector<1x256xi32> to vector<128x256xi32>
    %105 = arith.cmpi eq, %14, %104 : vector<128x256xi32>
    %cst_35 = arith.constant 0.000000e+00 : f32
    %106 = vector.shape_cast %103 : vector<1x256xf32> to vector<1x256xf32>
    %107 = vector.broadcast %106 : vector<1x256xf32> to vector<128x256xf32>
    %108 = vector.broadcast %cst_35 : f32 to vector<128x256xf32>
    %109 = arith.select %105, %107, %108 : vector<128x256xi1>, vector<128x256xf32>
    %110 = arith.addf %102, %109 : vector<128x256xf32>
    %111 = arith.mulf %79, %93 : vector<1x256xf32>
    %112 = vector.broadcast %46 : vector<1x256xi32> to vector<128x256xi32>
    %113 = arith.cmpi eq, %14, %112 : vector<128x256xi32>
    %cst_36 = arith.constant 0.000000e+00 : f32
    %114 = vector.shape_cast %111 : vector<1x256xf32> to vector<1x256xf32>
    %115 = vector.broadcast %114 : vector<1x256xf32> to vector<128x256xf32>
    %116 = vector.broadcast %cst_36 : f32 to vector<128x256xf32>
    %117 = arith.select %113, %115, %116 : vector<128x256xi1>, vector<128x256xf32>
    %118 = arith.addf %110, %117 : vector<128x256xf32>
    %119 = arith.mulf %83, %93 : vector<1x256xf32>
    %120 = vector.broadcast %58 : vector<1x256xi32> to vector<128x256xi32>
    %121 = arith.cmpi eq, %14, %120 : vector<128x256xi32>
    %cst_37 = arith.constant 0.000000e+00 : f32
    %122 = vector.shape_cast %119 : vector<1x256xf32> to vector<1x256xf32>
    %123 = vector.broadcast %122 : vector<1x256xf32> to vector<128x256xf32>
    %124 = vector.broadcast %cst_37 : f32 to vector<128x256xf32>
    %125 = arith.select %121, %123, %124 : vector<128x256xi1>, vector<128x256xf32>
    %126 = arith.addf %118, %125 : vector<128x256xf32>
    %127 = arith.mulf %87, %93 : vector<1x256xf32>
    %128 = vector.broadcast %70 : vector<1x256xi32> to vector<128x256xi32>
    %129 = arith.cmpi eq, %14, %128 : vector<128x256xi32>
    %cst_38 = arith.constant 0.000000e+00 : f32
    %130 = vector.shape_cast %127 : vector<1x256xf32> to vector<1x256xf32>
    %131 = vector.broadcast %130 : vector<1x256xf32> to vector<128x256xf32>
    %132 = vector.broadcast %cst_38 : f32 to vector<128x256xf32>
    %133 = arith.select %129, %131, %132 : vector<128x256xi1>, vector<128x256xf32>
    %134 = arith.addf %126, %133 : vector<128x256xf32>
    %cst_39 = arith.constant dense<0.000000e+00> : vector<32x256xf32>
    %135 = tpu.matmul %2, %134, %cst_39 {dimension_numbers = #tpu.dot_dimension_numbers<[1], [0], [0], [1], [0, 0, 1, 1], [], []>} : vector<32x128xf32>, vector<128x256xf32>, vector<32x256xf32> -> vector<32x256xf32>
    %c0_40 = arith.constant 0 : index
    %c0_41 = arith.constant 0 : index
    %136 = vector.load %arg5[%c0_40, %c0_41] : memref<32x256xf32, #tpu.memory_space<vmem>>, vector<32x256xf32>
    tpu.vector_store %arg5[%c0_40, %c0_41], %135 {strides = array<i32>} : memref<32x256xf32, #tpu.memory_space<vmem>>, vector<32x256xf32>,
    %137 = vector.shape_cast %22 : vector<1x256xi32> to vector<1x1x256xi32>
    %c0_42 = arith.constant 0 : index
    %c0_43 = arith.constant 0 : index
    %c0_44 = arith.constant 0 : index
    %138 = vector.load %arg6[%c0_42, %c0_43, %c0_44] : memref<1x1x256xi32, #tpu.memory_space<vmem>>, vector<1x1x256xi32>
    tpu.vector_store %arg6[%c0_42, %c0_43, %c0_44], %137 {strides = array<i32>} : memref<1x1x256xi32, #tpu.memory_space<vmem>>, vector<1x1x256xi32>,
    return
  }
  func.func @transform_0(%arg0: i32) -> (i32, i32) {
    %c0_i32 = arith.constant 0 : i32
    %c0_i32_0 = arith.constant 0 : i32
    return %c0_i32, %arg0 : i32, i32
  }
  func.func @transform_1(%arg0: i32) -> (i32, i32) {
    %c0_i32 = arith.constant 0 : i32
    %c0_i32_0 = arith.constant 0 : i32
    %c0_i32_1 = arith.constant 0 : i32
    return %c0_i32, %c0_i32_0 : i32, i32
  }
  func.func @transform_2(%arg0: i32) -> (i32, i32) {
    %c0_i32 = arith.constant 0 : i32
    %c0_i32_0 = arith.constant 0 : i32
    %c0_i32_1 = arith.constant 0 : i32
    return %c0_i32, %c0_i32_0 : i32, i32
  }
  func.func @transform_3(%arg0: i32) -> (i32, i32) {
    %c0_i32 = arith.constant 0 : i32
    %c0_i32_0 = arith.constant 0 : i32
    %c0_i32_1 = arith.constant 0 : i32
    return %c0_i32, %c0_i32_0 : i32, i32
  }
  func.func @transform_4(%arg0: i32) -> (i32, i32) {
    %c0_i32 = arith.constant 0 : i32
    %c0_i32_0 = arith.constant 0 : i32
    return %c0_i32, %arg0 : i32, i32
  }
  func.func @transform_5(%arg0: i32) -> (i32, i32, i32) {
    %c0_i32 = arith.constant 0 : i32
    %c0_i32_0 = arith.constant 0 : i32
    %c0_i32_1 = arith.constant 0 : i32
    return %arg0, %c0_i32, %c0_i32_0 : i32, i32, i32
  }
}

</mosaic_0001>

<llo_original>
// kernel: tpu_custom_call.1
$region0: #{tpu_custom_call.1}
  #allocation0 [shape = 'u32[]', space=smem, size = 0x4, offset = 0x4, fixed_abs, tag = 'smem constant byte address 0x4 - core index']
  #allocation1 [shape = 'u32[144,128]{1,0:T(1,128)}', space=vmem, size = 0x12000, scoped, tag = 'internal scratch']
  %s0 = inlined_call_operand.vmem [shape: f32[32,512], index: 0, kind: input, shape index: {}]
  %s1 = inlined_call_operand.vmem [shape: f32[128,32], index: 1, kind: input, shape index: {}]
  %s2 = inlined_call_operand.vmem [shape: f32[32,128], index: 2, kind: input, shape index: {}]
  %s3 = inlined_call_operand.vmem [shape: f32[128,1], index: 3, kind: input, shape index: {}]
  %s4 = inlined_call_operand.hbm [shape: f32[32,512], index: 4, kind: output, shape index: {0}]
  %s5 = inlined_call_operand.hbm [shape: s32[2,1,256], index: 5, kind: output, shape index: {1}]
  %6 = xla_tuple %s4, %s5
  %s7 = sld [smem:[#allocation0]]
  $region80: #{tpu_custom_call.1} parent=0
    _
  %s9 = ssub.s32 1, %s7
  %s10 = scalar_select 0, %s9, %s7
  $region1: #{tpu_custom_call.1} parent=0
    #allocation2 [shape = 'u8[65536]{0}', space=vmem, size = 0x10000, scoped, tag = 'input window, operand 0']
    #allocation3 [shape = 'u8[65536]{0}', space=vmem, size = 0x10000, scoped, tag = 'output window, operand 0']
    #allocation4 [shape = 's32[2]{0}', space=sflag, size = 0x8, scoped, tag = 'scoped memory for tpu_custom_call.1']
    #allocation5 [shape = 'u8[2048]{0}', space=vmem, size = 0x800, scoped, tag = 'output window, operand 1']
    #allocation6 [shape = 's32[2]{0}', space=sflag, size = 0x8, scoped, tag = 'scoped memory for tpu_custom_call.1']
    %11 = vsyncpa [#allocation4], 0
    %s12 = scalar_lea.sflag [#allocation4], 1
    %13 = vsyncpa %s12, 0
    %14 = vsyncpa [#allocation6], 0
    %s15 = scalar_lea.sflag [#allocation6], 1
    %16 = vsyncpa %s15, 0
    loop: start=0, step=1, limit=4
    $region2: #{tpu_custom_call.1} parent=1 // loop_pre_header
      _
    $region3: #{tpu_custom_call.1} parent=1 // loop_header
      %s18 = sphi 0, %s22
      %p19 = scmp.ge.s32.totalorder %s18, 4
      %s28 = sphi 0, %s30
      %s31 = sphi 0, %s28
      %s32 = sphi 0, %s31
      %s48 = sphi 0, %s32
      %s52 = sphi 0, %s52
      %s54 = sphi 0, %s52
      %s55 = sphi 0, %s54
      %s69 = sphi 0, %s55
      %s73 = sphi 0, %s73
      %s75 = sphi 0, %s73
      %s76 = sphi 0, %s75
      %s90 = sphi 0, %s76
      %s94 = sphi 0, %s94
      %s96 = sphi 0, %s94
      %s97 = sphi 0, %s96
      %s111 = sphi 0, %s97
      %s117 = sphi 0, %s119
      %s120 = sphi 0, %s117
      %s121 = sphi 0, %s120
      %s137 = sphi 0, %s121
      %s143 = sphi 0, %s145
      %s146 = sphi 0, %s143
      %s147 = sphi 0, %s146
      %s163 = sphi 0, %s147
    $region4: #{tpu_custom_call.1} parent=1 // loop_header_branch
      %21 = sbr.rel (%p19) target = $region8
    $region5: #{tpu_custom_call.1} parent=1 // loop_body
      %s23 = ssub.s32 %s18, 1
      %s24 = ssub.s32 %s18, 2
      %s25 = sadd.s32 %s18, 1
      %s26 = ssub.s32 %s18, %s25
      %p27 = scmp.eq.s32.totalorder %s26, 0
      %s29 = sadd.s32 %s28, 1
      %s30 = scalar_select %p27, %s28, %s29
      %p33 = pneg %p27
      %p34 = scmp.eq.s32.totalorder %s18, 1
      %p35 = por %p33, %p34
      %p36 = scmp.ne.s32.totalorder %s28, %s31
      %p37 = scmp.eq.s32.totalorder %s18, 0
      %p38 = por %p36, %p37
      %p39 = scmp.ne.s32.totalorder %s28, %s31
      %p40 = scmp.eq.s32.totalorder %s23, 1
      %p41 = por %p39, %p40
      %p42 = scmp.ne.s32.totalorder %s31, %s32
      %p43 = scmp.eq.s32.totalorder %s23, 0
      %p44 = por %p42, %p43
      %p45 = scmp.ne.s32.totalorder %s31, %s32
      %p46 = scmp.eq.s32.totalorder %s24, 1
      %p47 = por %p45, %p46
      %p49 = scmp.ne.s32.totalorder %s32, %s48
      %p50 = scmp.eq.s32.totalorder %s24, 0
      %p51 = por %p49, %p50
      %s53 = sadd.s32 %s52, 1
      %p56 = scmp.eq.s32.totalorder %s18, 1
      %p57 = scmp.ne.s32.totalorder %s52, %s54
      %p58 = scmp.eq.s32.totalorder %s18, 0
      %p59 = por %p57, %p58
      %p60 = scmp.ne.s32.totalorder %s52, %s54
      %p61 = scmp.eq.s32.totalorder %s23, 1
      %p62 = por %p60, %p61
      %p63 = scmp.ne.s32.totalorder %s54, %s55
      %p64 = scmp.eq.s32.totalorder %s23, 0
      %p65 = por %p63, %p64
      %p66 = scmp.ne.s32.totalorder %s54, %s55
      %p67 = scmp.eq.s32.totalorder %s24, 1
      %p68 = por %p66, %p67
      %p70 = scmp.ne.s32.totalorder %s55, %s69
      %p71 = scmp.eq.s32.totalorder %s24, 0
      %p72 = por %p70, %p71
      %s74 = sadd.s32 %s73, 1
      %p77 = scmp.eq.s32.totalorder %s18, 1
      %p78 = scmp.ne.s32.totalorder %s73, %s75
      %p79 = scmp.eq.s32.totalorder %s18, 0
      %p80 = por %p78, %p79
      %p81 = scmp.ne.s32.totalorder %s73, %s75
      %p82 = scmp.eq.s32.totalorder %s23, 1
      %p83 = por %p81, %p82
      %p84 = scmp.ne.s32.totalorder %s75, %s76
      %p85 = scmp.eq.s32.totalorder %s23, 0
      %p86 = por %p84, %p85
      %p87 = scmp.ne.s32.totalorder %s75, %s76
      %p88 = scmp.eq.s32.totalorder %s24, 1
      %p89 = por %p87, %p88
      %p91 = scmp.ne.s32.totalorder %s76, %s90
      %p92 = scmp.eq.s32.totalorder %s24, 0
      %p93 = por %p91, %p92
      %s95 = sadd.s32 %s94, 1
      %p98 = scmp.eq.s32.totalorder %s18, 1
      %p99 = scmp.ne.s32.totalorder %s94, %s96
      %p100 = scmp.eq.s32.totalorder %s18, 0
      %p101 = por %p99, %p100
      %p102 = scmp.ne.s32.totalorder %s94, %s96
      %p103 = scmp.eq.s32.totalorder %s23, 1
      %p104 = por %p102, %p103
      %p105 = scmp.ne.s32.totalorder %s96, %s97
      %p106 = scmp.eq.s32.totalorder %s23, 0
      %p107 = por %p105, %p106
      %p108 = scmp.ne.s32.totalorder %s96, %s97
      %p109 = scmp.eq.s32.totalorder %s24, 1
      %p110 = por %p108, %p109
      %p112 = scmp.ne.s32.totalorder %s97, %s111
      %p113 = scmp.eq.s32.totalorder %s24, 0
      %p114 = por %p112, %p113
      %s115 = ssub.s32 %s18, %s25
      %p116 = scmp.eq.s32.totalorder %s115, 0
      %s118 = sadd.s32 %s117, 1
      %s119 = scalar_select %p116, %s117, %s118
      %p122 = pneg %p116
      %p123 = scmp.eq.s32.totalorder %s18, 1
      %p124 = por %p122, %p123
      %p125 = scmp.ne.s32.totalorder %s117, %s120
      %p126 = scmp.eq.s32.totalorder %s18, 0
      %p127 = por %p125, %p126
      %p128 = scmp.ne.s32.totalorder %s117, %s120
      %p129 = scmp.eq.s32.totalorder %s23, 1
      %p130 = por %p128, %p129
      %p131 = scmp.ne.s32.totalorder %s120, %s121
      %p132 = scmp.eq.s32.totalorder %s23, 0
      %p133 = por %p131, %p132
      %p134 = scmp.ne.s32.totalorder %s120, %s121
      %p135 = scmp.eq.s32.totalorder %s24, 1
      %p136 = por %p134, %p135
      %p138 = scmp.ne.s32.totalorder %s121, %s137
      %p139 = scmp.eq.s32.totalorder %s24, 0
      %p140 = por %p138, %p139
      %s141 = ssub.s32 %s18, %s25
      %p142 = scmp.eq.s32.totalorder %s141, 0
      %s144 = sadd.s32 %s143, 1
      %s145 = scalar_select %p142, %s143, %s144
      %p148 = pneg %p142
      %p149 = scmp.eq.s32.totalorder %s18, 1
      %p150 = por %p148, %p149
      %p151 = scmp.ne.s32.totalorder %s143, %s146
      %p152 = scmp.eq.s32.totalorder %s18, 0
      %p153 = por %p151, %p152
      %p154 = scmp.ne.s32.totalorder %s143, %s146
      %p155 = scmp.eq.s32.totalorder %s23, 1
      %p156 = por %p154, %p155
      %p157 = scmp.ne.s32.totalorder %s146, %s147
      %p158 = scmp.eq.s32.totalorder %s23, 0
      %p159 = por %p157, %p158
      %p160 = scmp.ne.s32.totalorder %s146, %s147
      %p161 = scmp.eq.s32.totalorder %s24, 1
      %p162 = por %p160, %p161
      %p164 = scmp.ne.s32.totalorder %s147, %s163
      %p165 = scmp.eq.s32.totalorder %s24, 0
      %p166 = por %p164, %p165
      %p167 = scmp.le.s32.totalorder 1, %s18
      %p168 = scmp.lt.s32.totalorder %s18, 3
      %p169 = pnand %p167, %p168
      %p170 = pneg %p169
      // Predicated region
      $region9: #{tpu_custom_call.1} parent=5 // pred_check
        _
      $region10: #{tpu_custom_call.1} parent=5 // pred_check_branch
        %172 = sbr.rel (%p169) target = $region12
      $region11: #{tpu_custom_call.1} parent=5 // pred_region
        %s173 = ssub.s32 %s18, 1
        // Predicated region
        $region13: #{tpu_custom_call.1} parent=11 // pred_check
          %p174 = pneg %p65
        $region14: #{tpu_custom_call.1} parent=11 // pred_check_branch
          %176 = sbr.rel (%p174) target = $region16
        $region15: #{tpu_custom_call.1} parent=11 // pred_region
          _
        $region16: #{tpu_custom_call.1} parent=11 // pred_fallthru
          _
        // Predicated region
        $region17: #{tpu_custom_call.1} parent=11 // pred_check
          %p177 = pneg %p86
        $region18: #{tpu_custom_call.1} parent=11 // pred_check_branch
          %179 = sbr.rel (%p177) target = $region20
        $region19: #{tpu_custom_call.1} parent=11 // pred_region
          _
        $region20: #{tpu_custom_call.1} parent=11 // pred_fallthru
          _
        // Predicated region
        $region21: #{tpu_custom_call.1} parent=11 // pred_check
          %p180 = pneg %p107
        $region22: #{tpu_custom_call.1} parent=11 // pred_check_branch
          %182 = sbr.rel (%p180) target = $region24
        $region23: #{tpu_custom_call.1} parent=11 // pred_region
          _
        $region24: #{tpu_custom_call.1} parent=11 // pred_fallthru
          _
      $region12: #{tpu_custom_call.1} parent=5 // pred_fallthru
        _
      %p183 = scmp.lt.s32.totalorder %s18, 2
      // Predicated region
      $region25: #{tpu_custom_call.1} parent=5 // pred_check
        %p184 = pneg %p183
      $region26: #{tpu_custom_call.1} parent=5 // pred_check_branch
        %186 = sbr.rel (%p184) target = $region28
      $region27: #{tpu_custom_call.1} parent=5 // pred_region
        // Predicated region
        $region29: #{tpu_custom_call.1} parent=27 // pred_check
          %p187 = pneg %p38
        $region30: #{tpu_custom_call.1} parent=27 // pred_check_branch
          %189 = sbr.rel (%p187) target = $region32
        $region31: #{tpu_custom_call.1} parent=27 // pred_region
          %s190 = sand.u32 %s28, 1
          %s191 = sand.u32 %s28, 1
          %s192 = smul.addr %s191, 64
          %s193 = scalar_lea.vmem [#allocation2], %s192
          %s194 = smul.u32 2, %s18
          %s195 = smul.addr %s194, 8
          %s196 = scalar_lea.vmem %s0, %s195
          // Predicated region
          $region33: #{tpu_custom_call.1} parent=31 // pred_check
            _
          $region34: #{tpu_custom_call.1} parent=31 // pred_check_branch
            %198 = sbr.rel (0) target = $region36
          $region35: #{tpu_custom_call.1} parent=31 // pred_region
            // Predicated region
            $region37: #{tpu_custom_call.1} parent=35 // pred_check
              _
            $region38: #{tpu_custom_call.1} parent=35 // pred_check_branch
              %200 = sbr.rel (0) target = $region40
            $region39: #{tpu_custom_call.1} parent=35 // pred_region
              loop: start=0, step=1, limit=1
              $region41: #{tpu_custom_call.1} parent=39 // loop_pre_header
                _
              $region42: #{tpu_custom_call.1} parent=39 // loop_header
                %s202 = sphi 0, %s206
                %p203 = scmp.ge.s32.totalorder %s202, 1
                %s207 = sphi %s196, %s196
                %s208 = sphi %s193, %s193
              $region43: #{tpu_custom_call.1} parent=39 // loop_header_branch
                %205 = sbr.rel (%p203) target = $region47
              $region44: #{tpu_custom_call.1} parent=39 // loop_body
                %v209 = vld [vmem:[%s207] sm:$0xff]
                %210 = vst [vmem:[%s208] sm:$0xff] %v209
                %v211 = vld [vmem:[%s207 + $0x8] sm:$0xff]
                %212 = vst [vmem:[%s208 + $0x8] sm:$0xff] %v211
                %v213 = vld [vmem:[%s207 + $0x20] sm:$0xff]
                %214 = vst [vmem:[%s208 + $0x10] sm:$0xff] %v213
                %v215 = vld [vmem:[%s207 + $0x28] sm:$0xff]
                %216 = vst [vmem:[%s208 + $0x18] sm:$0xff] %v215
                %v217 = vld [vmem:[%s207 + $0x40] sm:$0xff]
                %218 = vst [vmem:[%s208 + $0x20] sm:$0xff] %v217
                %v219 = vld [vmem:[%s207 + $0x48] sm:$0xff]
                %220 = vst [vmem:[%s208 + $0x28] sm:$0xff] %v219
                %v221 = vld [vmem:[%s207 + $0x60] sm:$0xff]
                %222 = vst [vmem:[%s208 + $0x30] sm:$0xff] %v221
                %v223 = vld [vmem:[%s207 + $0x68] sm:$0xff]
                %224 = vst [vmem:[%s208 + $0x38] sm:$0xff] %v223
              $region45: #{tpu_custom_call.1} parent=39 // loop_footer
                %s206 = sadd.s32 1, %s202
              $region46: #{tpu_custom_call.1} parent=39 // loop_footer_branch
                %201 = sbr.rel target = $region42
              $region47: #{tpu_custom_call.1} parent=39 // loop_exit
                _
            $region40: #{tpu_custom_call.1} parent=35 // pred_fallthru
              _
            // Predicated region
            $region48: #{tpu_custom_call.1} parent=35 // pred_check
              _
            $region49: #{tpu_custom_call.1} parent=35 // pred_check_branch
              %226 = sbr.rel target = $region51
            $region50: #{tpu_custom_call.1} parent=35 // pred_region
              _
            $region51: #{tpu_custom_call.1} parent=35 // pred_fallthru
              _
          $region36: #{tpu_custom_call.1} parent=31 // pred_fallthru
            _
          %227 = vnop
        $region32: #{tpu_custom_call.1} parent=27 // pred_fallthru
          _
      $region28: #{tpu_custom_call.1} parent=5 // pred_fallthru
        _
      %p228 = scmp.le.s32.totalorder 1, %s18
      %p229 = scmp.lt.s32.totalorder %s18, 3
      %p230 = pnand %p228, %p229
      %p231 = pneg %p230
      // Predicated region
      $region52: #{tpu_custom_call.1} parent=5 // pred_check
        _
      $region53: #{tpu_custom_call.1} parent=5 // pred_check_branch
        %233 = sbr.rel (%p230) target = $region55
      $region54: #{tpu_custom_call.1} parent=5 // pred_region
        %s234 = ssub.s32 %s18, 1
        %s235 = sand.u32 %s31, 1
        %s236 = sand.u32 %s31, 1
        %s237 = smul.addr %s236, 64
        %s238 = scalar_lea.vmem [#allocation2], %s237
        // Predicated region
        $region56: #{tpu_custom_call.1} parent=54 // pred_check
          %p239 = pneg %p44
        $region57: #{tpu_custom_call.1} parent=54 // pred_check_branch
          %241 = sbr.rel (%p239) target = $region59
        $region58: #{tpu_custom_call.1} parent=54 // pred_region
          _
        $region59: #{tpu_custom_call.1} parent=54 // pred_fallthru
          _
        %s242 = sand.u32 %s31, 1
        %s243 = sand.u32 %s31, 1
        %s244 = smul.addr %s243, 64
        %s245 = scalar_lea.vmem [#allocation2], %s244
        %p246 = pneg %p44
        %p247 = pneg %p41
        %p248 = pneg %p65
        %p249 = pneg %p62
        %p250 = pneg %p86
        %p251 = pneg %p83
        %p252 = pneg %p107
        %p253 = pneg %p104
        %p254 = pneg %p133
        %p255 = pneg %p130
        %s256 = sand.u32 %s120, 1
        %s257 = scalar_lea.sflag [#allocation4], %s256
        %s258 = sand.u32 %s120, 1
        %s259 = smul.addr %s258, 64
        %s260 = scalar_lea.vmem [#allocation3], %s259
        %p261 = pneg %p159
        %p262 = pneg %p156
        %s263 = sand.u32 %s146, 1
        %s264 = scalar_lea.sflag [#allocation6], %s263
        %s265 = sand.u32 %s146, 1
        %s266 = smul.addr %s265, 2
        %s267 = scalar_lea.vmem [#allocation5], %s266
        %s268 = smul.u32 2, %s23
        %s269 = smul.u32 2, %s23
        %v270 = vld [vmem:[%s238] sm:$0xff]
        %v271 = vld [vmem:[%s238 + $0x8] sm:$0xff]
        %v272 = vld [vmem:[%s238 + $0x10] sm:$0xff]
        %v273 = vld [vmem:[%s238 + $0x18] sm:$0xff]
        %v274 = vld [vmem:[%s238 + $0x20] sm:$0xff]
        %v275 = vld [vmem:[%s238 + $0x28] sm:$0xff]
        %v276 = vld [vmem:[%s238 + $0x30] sm:$0xff]
        %v277 = vld [vmem:[%s238 + $0x38] sm:$0xff]
        %v278 = vld [vmem:[%s1] sm:$0xff]
        %v279 = vld [vmem:[%s1 + $0x8] sm:$0xff]
        %v280 = vld [vmem:[%s1 + $0x10] sm:$0xff]
        %v281 = vld [vmem:[%s1 + $0x18] sm:$0xff]
        %v282 = vld [vmem:[%s1 + $0x20] sm:$0xff]
        %v283 = vld [vmem:[%s1 + $0x28] sm:$0xff]
        %v284 = vld [vmem:[%s1 + $0x30] sm:$0xff]
        %v285 = vld [vmem:[%s1 + $0x38] sm:$0xff]
        %v286 = vld [vmem:[%s1 + $0x40] sm:$0xff]
        %v287 = vld [vmem:[%s1 + $0x48] sm:$0xff]
        %v288 = vld [vmem:[%s1 + $0x50] sm:$0xff]
        %v289 = vld [vmem:[%s1 + $0x58] sm:$0xff]
        %v290 = vld [vmem:[%s1 + $0x60] sm:$0xff]
        %v291 = vld [vmem:[%s1 + $0x68] sm:$0xff]
        %v292 = vld [vmem:[%s1 + $0x70] sm:$0xff]
        %v293 = vld [vmem:[%s1 + $0x78] sm:$0xff]
        %v294 = vld [vmem:[%s2] sm:$0xff]
        %v295 = vld [vmem:[%s2 + $0x8] sm:$0xff]
        %v296 = vld [vmem:[%s2 + $0x10] sm:$0xff]
        %v297 = vld [vmem:[%s2 + $0x18] sm:$0xff]
        %v298 = vld [vmem:[%s3] sm:$0xff]
        %v299 = vld [vmem:[%s3 + $0x8] sm:$0xff]
        %v300 = vld [vmem:[%s3 + $0x10] sm:$0xff]
        %v301 = vld [vmem:[%s3 + $0x18] sm:$0xff]
        %v302 = vld [vmem:[%s3 + $0x20] sm:$0xff]
        %v303 = vld [vmem:[%s3 + $0x28] sm:$0xff]
        %v304 = vld [vmem:[%s3 + $0x30] sm:$0xff]
        %v305 = vld [vmem:[%s3 + $0x38] sm:$0xff]
        %v306 = vld [vmem:[%s3 + $0x40] sm:$0xff]
        %v307 = vld [vmem:[%s3 + $0x48] sm:$0xff]
        %v308 = vld [vmem:[%s3 + $0x50] sm:$0xff]
        %v309 = vld [vmem:[%s3 + $0x58] sm:$0xff]
        %v310 = vld [vmem:[%s3 + $0x60] sm:$0xff]
        %v311 = vld [vmem:[%s3 + $0x68] sm:$0xff]
        %v312 = vld [vmem:[%s3 + $0x70] sm:$0xff]
        %v313 = vld [vmem:[%s3 + $0x78] sm:$0xff]
        %v314 = vmul.f32 %v270, %v270
        %v315 = vmul.f32 %v271, %v271
        %v316 = vmul.f32 %v272, %v272
        %v317 = vmul.f32 %v273, %v273
        %v318 = vmul.f32 %v274, %v274
        %v319 = vmul.f32 %v275, %v275
        %v320 = vmul.f32 %v276, %v276
        %v321 = vmul.f32 %v277, %v277
        %v322 = vadd.f32 %v314, %v316
        %v323 = vadd.f32 %v322, %v318
        %v324 = vadd.f32 %v323, %v320
        %v325 = vrot.slane %v324, 4
        %v326 = vadd.f32 %v324, %v325
        %v327 = vrot.slane %v326, 2
        %v328 = vadd.f32 %v326, %v327
        %v329 = vrot.slane %v328, 1
        %v330 = vadd.f32 %v328, %v329
        %v331 = vadd.f32 %v315, %v317
        %v332 = vadd.f32 %v331, %v319
        %v333 = vadd.f32 %v332, %v321
        %v334 = vrot.slane %v333, 4
        %v335 = vadd.f32 %v333, %v334
        %v336 = vrot.slane %v335, 2
        %v337 = vadd.f32 %v335, %v336
        %v338 = vrot.slane %v337, 1
        %v339 = vadd.f32 %v337, %v338
        %vm340 = vcmask 261120
        %v342 = vsel %vm340, %v278, 0
        %v345 = vsel %vm340, %v279, 0
        %v348 = vsel %vm340, %v280, 0
        %v351 = vsel %vm340, %v281, 0
        %v354 = vsel %vm340, %v282, 0
        %v357 = vsel %vm340, %v283, 0
        %v360 = vsel %vm340, %v284, 0
        %v363 = vsel %vm340, %v285, 0
        %v366 = vsel %vm340, %v286, 0
        %v369 = vsel %vm340, %v287, 0
        %v372 = vsel %vm340, %v288, 0
        %v375 = vsel %vm340, %v289, 0
        %v378 = vsel %vm340, %v290, 0
        %v381 = vsel %vm340, %v291, 0
        %v384 = vsel %vm340, %v292, 0
        %v387 = vsel %vm340, %v293, 0
        %389 = vmatprep.subr.mxu0 0.0
        %390 = vmatpush1.msra.mxu0 0.0
        %391 = vmatprep.subr.mxu0 0.0
        %392 = vmatpush1.msra.mxu0 0.0
        %393 = vmatprep.subr.mxu0 0.0
        %394 = vmatpush1.msra.mxu0 0.0
        %395 = vmatprep.subr.mxu0 0.0
        %396 = vmatpush1.msra.mxu0 0.0
        %397 = vmatprep.subr.mxu0 0.0
        %398 = vmatpush1.msra.mxu0 0.0
        %399 = vmatprep.subr.mxu0 0.0
        %400 = vmatpush1.msra.mxu0 0.0
        %401 = vmatprep.subr.mxu0 0.0
        %402 = vmatpush1.msra.mxu0 0.0
        %403 = vmatprep.subr.mxu0 0.0
        %404 = vmatpush1.msra.mxu0 0.0
        %405 = vmatprep.subr.mxu0 0.0
        %406 = vmatpush1.msra.mxu0 0.0
        %407 = vmatprep.subr.mxu0 0.0
        %408 = vmatpush1.msra.mxu0 0.0
        %409 = vmatprep.subr.mxu0 0.0
        %410 = vmatpush1.msra.mxu0 0.0
        %411 = vmatprep.subr.mxu0 0.0
        %412 = vmatpush1.msra.mxu0 0.0
        %413 = vmatprep.subr.mxu0 %v277
        %414 = vmatpush1.msra.mxu0 %v276
        %415 = vmatprep.subr.mxu0 %v275
        %416 = vmatpush1.msra.mxu0 %v274
        %417 = vmatprep.subr.mxu0 %v273
        %418 = vmatpush1.msra.mxu0 %v272
        %419 = vmatprep.subr.mxu0 %v271
        %420 = vmatpush1.msra.mxu0 %v270
        %421 = vmatprep.subr.mxu0 0.0
        %422 = vmatpush2.msra.mxu0 0.0
        %423 = vmatprep.subr.mxu0 0.0
        %424 = vmatpush2.msra.mxu0 0.0
        %425 = vmatprep.subr.mxu0 0.0
        %426 = vmatpush2.msra.mxu0 0.0
        %427 = vmatprep.subr.mxu0 0.0
        %428 = vmatpush2.msra.mxu0 0.0
        %429 = vmatprep.subr.mxu0 0.0
        %430 = vmatpush2.msra.mxu0 0.0
        %431 = vmatprep.subr.mxu0 0.0
        %432 = vmatpush2.msra.mxu0 0.0
        %433 = vmatprep.subr.mxu0 0.0
        %434 = vmatpush2.msra.mxu0 0.0
        %435 = vmatprep.subr.mxu0 0.0
        %436 = vmatpush2.msra.mxu0 0.0
        %437 = vmatprep.subr.mxu0 0.0
        %438 = vmatpush2.msra.mxu0 0.0
        %439 = vmatprep.subr.mxu0 0.0
        %440 = vmatpush2.msra.mxu0 0.0
        %441 = vmatprep.subr.mxu0 0.0
        %442 = vmatpush2.msra.mxu0 0.0
        %443 = vmatprep.subr.mxu0 0.0
        %444 = vmatpush2.msra.mxu0 0.0
        %445 = vmatprep.subr.mxu0 0.0
        %446 = vmatpush2.msra.mxu0 0.0
        %447 = vmatprep.subr.mxu0 0.0
        %448 = vmatpush2.msra.mxu0 0.0
        %449 = vmatprep.subr.mxu0 0.0
        %450 = vmatpush2.msra.mxu0 0.0
        %451 = vmatprep.subr.mxu0 0.0
        %452 = vmatpush2.msra.mxu0 0.0
        %453 = vmatprep.mubr.f32.mxu0 0.0
        %454 = vmatmul.mubr.f32.gmra.mxu0 %v342
        %v455 = vpop.f32.mrf.mxu0
        %v456 = vadd.f32 0.0, %v455
        %v457 = vpop.f32.mrf.mxu0
        %v458 = vadd.f32 0.0, %v457
        %459 = vmatprep.mubr.f32.mxu0 0.0
        %460 = vmatmul.mubr.f32.gmra.mxu0 %v345
        %v461 = vpop.f32.mrf.mxu0
        %v462 = vadd.f32 0.0, %v461
        %v463 = vpop.f32.mrf.mxu0
        %v464 = vadd.f32 0.0, %v463
        %465 = vmatprep.mubr.f32.mxu0 0.0
        %466 = vmatmul.mubr.f32.gmra.mxu0 %v348
        %v467 = vpop.f32.mrf.mxu0
        %v468 = vadd.f32 0.0, %v467
        %v469 = vpop.f32.mrf.mxu0
        %v470 = vadd.f32 0.0, %v469
        %471 = vmatprep.mubr.f32.mxu0 0.0
        %472 = vmatmul.mubr.f32.gmra.mxu0 %v351
        %v473 = vpop.f32.mrf.mxu0
        %v474 = vadd.f32 0.0, %v473
        %v475 = vpop.f32.mrf.mxu0
        %v476 = vadd.f32 0.0, %v475
        %477 = vmatprep.mubr.f32.mxu0 0.0
        %478 = vmatmul.mubr.f32.gmra.mxu0 %v354
        %v479 = vpop.f32.mrf.mxu0
        %v480 = vadd.f32 0.0, %v479
        %v481 = vpop.f32.mrf.mxu0
        %v482 = vadd.f32 0.0, %v481
        %483 = vmatprep.mubr.f32.mxu0 0.0
        %484 = vmatmul.mubr.f32.gmra.mxu0 %v357
        %v485 = vpop.f32.mrf.mxu0
        %v486 = vadd.f32 0.0, %v485
        %v487 = vpop.f32.mrf.mxu0
        %v488 = vadd.f32 0.0, %v487
        %489 = vmatprep.mubr.f32.mxu0 0.0
        %490 = vmatmul.mubr.f32.gmra.mxu0 %v360
        %v491 = vpop.f32.mrf.mxu0
        %v492 = vadd.f32 0.0, %v491
        %v493 = vpop.f32.mrf.mxu0
        %v494 = vadd.f32 0.0, %v493
        %495 = vmatprep.mubr.f32.mxu0 0.0
        %496 = vmatmul.mubr.f32.gmra.mxu0 %v363
        %v497 = vpop.f32.mrf.mxu0
        %v498 = vadd.f32 0.0, %v497
        %v499 = vpop.f32.mrf.mxu0
        %v500 = vadd.f32 0.0, %v499
        %501 = vmatprep.mubr.f32.mxu0 0.0
        %502 = vmatmul.mubr.f32.gmra.mxu0 %v366
        %v503 = vpop.f32.mrf.mxu0
        %v504 = vadd.f32 0.0, %v503
        %v505 = vpop.f32.mrf.mxu0
        %v506 = vadd.f32 0.0, %v505
        %507 = vmatprep.mubr.f32.mxu0 0.0
        %508 = vmatmul.mubr.f32.gmra.mxu0 %v369
        %v509 = vpop.f32.mrf.mxu0
        %v510 = vadd.f32 0.0, %v509
        %v511 = vpop.f32.mrf.mxu0
        %v512 = vadd.f32 0.0, %v511
        %513 = vmatprep.mubr.f32.mxu0 0.0
        %514 = vmatmul.mubr.f32.gmra.mxu0 %v372
        %v515 = vpop.f32.mrf.mxu0
        %v516 = vadd.f32 0.0, %v515
        %v517 = vpop.f32.mrf.mxu0
        %v518 = vadd.f32 0.0, %v517
        %519 = vmatprep.mubr.f32.mxu0 0.0
        %520 = vmatmul.mubr.f32.gmra.mxu0 %v375
        %v521 = vpop.f32.mrf.mxu0
        %v522 = vadd.f32 0.0, %v521
        %v523 = vpop.f32.mrf.mxu0
        %v524 = vadd.f32 0.0, %v523
        %525 = vmatprep.mubr.f32.mxu0 0.0
        %526 = vmatmul.mubr.f32.gmra.mxu0 %v378
        %v527 = vpop.f32.mrf.mxu0
        %v528 = vadd.f32 0.0, %v527
        %v529 = vpop.f32.mrf.mxu0
        %v530 = vadd.f32 0.0, %v529
        %531 = vmatprep.mubr.f32.mxu0 0.0
        %532 = vmatmul.mubr.f32.gmra.mxu0 %v381
        %v533 = vpop.f32.mrf.mxu0
        %v534 = vadd.f32 0.0, %v533
        %v535 = vpop.f32.mrf.mxu0
        %v536 = vadd.f32 0.0, %v535
        %537 = vmatprep.mubr.f32.mxu0 0.0
        %538 = vmatmul.mubr.f32.gmra.mxu0 %v384
        %v539 = vpop.f32.mrf.mxu0
        %v540 = vadd.f32 0.0, %v539
        %v541 = vpop.f32.mrf.mxu0
        %v542 = vadd.f32 0.0, %v541
        %543 = vmatprep.mubr.f32.mxu0 0.0
        %544 = vmatmul.mubr.f32.gmra.mxu0 %v387
        %v545 = vpop.f32.mrf.mxu0
        %v546 = vadd.f32 0.0, %v545
        %v547 = vpop.f32.mrf.mxu0
        %v548 = vadd.f32 0.0, %v547
        %549 = vdwg.mxu0
        %551 = vset.pattern.permute.xlu0 0
        %552 = vperm.xlu0 %551, %v298
        %v553 = vpop.permute.xlu0 %552
        %556 = vset.pattern.permute.xlu0 0
        %557 = vperm.xlu0 %556, %v299
        %v558 = vpop.permute.xlu0 %557
        %561 = vset.pattern.permute.xlu0 0
        %562 = vperm.xlu0 %561, %v300
        %v563 = vpop.permute.xlu0 %562
        %566 = vset.pattern.permute.xlu0 0
        %567 = vperm.xlu0 %566, %v301
        %v568 = vpop.permute.xlu0 %567
        %571 = vset.pattern.permute.xlu0 0
        %572 = vperm.xlu0 %571, %v302
        %v573 = vpop.permute.xlu0 %572
        %576 = vset.pattern.permute.xlu0 0
        %577 = vperm.xlu0 %576, %v303
        %v578 = vpop.permute.xlu0 %577
        %581 = vset.pattern.permute.xlu0 0
        %582 = vperm.xlu0 %581, %v304
        %v583 = vpop.permute.xlu0 %582
        %586 = vset.pattern.permute.xlu0 0
        %587 = vperm.xlu0 %586, %v305
        %v588 = vpop.permute.xlu0 %587
        %591 = vset.pattern.permute.xlu0 0
        %592 = vperm.xlu0 %591, %v306
        %v593 = vpop.permute.xlu0 %592
        %596 = vset.pattern.permute.xlu0 0
        %597 = vperm.xlu0 %596, %v307
        %v598 = vpop.permute.xlu0 %597
        %601 = vset.pattern.permute.xlu0 0
        %602 = vperm.xlu0 %601, %v308
        %v603 = vpop.permute.xlu0 %602
        %606 = vset.pattern.permute.xlu0 0
        %607 = vperm.xlu0 %606, %v309
        %v608 = vpop.permute.xlu0 %607
        %611 = vset.pattern.permute.xlu0 0
        %612 = vperm.xlu0 %611, %v310
        %v613 = vpop.permute.xlu0 %612
        %616 = vset.pattern.permute.xlu0 0
        %617 = vperm.xlu0 %616, %v311
        %v618 = vpop.permute.xlu0 %617
        %621 = vset.pattern.permute.xlu0 0
        %622 = vperm.xlu0 %621, %v312
        %v623 = vpop.permute.xlu0 %622
        %626 = vset.pattern.permute.xlu0 0
        %627 = vperm.xlu0 %626, %v313
        %v628 = vpop.permute.xlu0 %627
        %v630 = vadd.f32 %v330, %v553
        %v631 = vadd.f32 %v339, %v553
        %v632 = vadd.f32 %v330, %v558
        %v633 = vadd.f32 %v339, %v558
        %v634 = vadd.f32 %v330, %v563
        %v635 = vadd.f32 %v339, %v563
        %v636 = vadd.f32 %v330, %v568
        %v637 = vadd.f32 %v339, %v568
        %v638 = vadd.f32 %v330, %v573
        %v639 = vadd.f32 %v339, %v573
        %v640 = vadd.f32 %v330, %v578
        %v641 = vadd.f32 %v339, %v578
        %v642 = vadd.f32 %v330, %v583
        %v643 = vadd.f32 %v339, %v583
        %v644 = vadd.f32 %v330, %v588
        %v645 = vadd.f32 %v339, %v588
        %v646 = vadd.f32 %v330, %v593
        %v647 = vadd.f32 %v339, %v593
        %v648 = vadd.f32 %v330, %v598
        %v649 = vadd.f32 %v339, %v598
        %v650 = vadd.f32 %v330, %v603
        %v651 = vadd.f32 %v339, %v603
        %v652 = vadd.f32 %v330, %v608
        %v653 = vadd.f32 %v339, %v608
        %v654 = vadd.f32 %v330, %v613
        %v655 = vadd.f32 %v339, %v613
        %v656 = vadd.f32 %v330, %v618
        %v657 = vadd.f32 %v339, %v618
        %v658 = vadd.f32 %v330, %v623
        %v659 = vadd.f32 %v339, %v623
        %v660 = vadd.f32 %v330, %v628
        %v661 = vadd.f32 %v339, %v628
        %v662 = vmul.f32 %v456, 2.0
        %v663 = vmul.f32 %v458, 2.0
        %v664 = vmul.f32 %v462, 2.0
        %v665 = vmul.f32 %v464, 2.0
        %v666 = vmul.f32 %v468, 2.0
        %v667 = vmul.f32 %v470, 2.0
        %v668 = vmul.f32 %v474, 2.0
        %v669 = vmul.f32 %v476, 2.0
        %v670 = vmul.f32 %v480, 2.0
        %v671 = vmul.f32 %v482, 2.0
        %v672 = vmul.f32 %v486, 2.0
        %v673 = vmul.f32 %v488, 2.0
        %v674 = vmul.f32 %v492, 2.0
        %v675 = vmul.f32 %v494, 2.0
        %v676 = vmul.f32 %v498, 2.0
        %v677 = vmul.f32 %v500, 2.0
        %v678 = vmul.f32 %v504, 2.0
        %v679 = vmul.f32 %v506, 2.0
        %v680 = vmul.f32 %v510, 2.0
        %v681 = vmul.f32 %v512, 2.0
        %v682 = vmul.f32 %v516, 2.0
        %v683 = vmul.f32 %v518, 2.0
        %v684 = vmul.f32 %v522, 2.0
        %v685 = vmul.f32 %v524, 2.0
        %v686 = vmul.f32 %v528, 2.0
        %v687 = vmul.f32 %v530, 2.0
        %v688 = vmul.f32 %v534, 2.0
        %v689 = vmul.f32 %v536, 2.0
        %v690 = vmul.f32 %v540, 2.0
        %v691 = vmul.f32 %v542, 2.0
        %v692 = vmul.f32 %v546, 2.0
        %v693 = vmul.f32 %v548, 2.0
        %v694 = vsub.f32 %v630, %v662
        %v695 = vsub.f32 %v631, %v663
        %v696 = vsub.f32 %v632, %v664
        %v697 = vsub.f32 %v633, %v665
        %v698 = vsub.f32 %v634, %v666
        %v699 = vsub.f32 %v635, %v667
        %v700 = vsub.f32 %v636, %v668
        %v701 = vsub.f32 %v637, %v669
        %v702 = vsub.f32 %v638, %v670
        %v703 = vsub.f32 %v639, %v671
        %v704 = vsub.f32 %v640, %v672
        %v705 = vsub.f32 %v641, %v673
        %v706 = vsub.f32 %v642, %v674
        %v707 = vsub.f32 %v643, %v675
        %v708 = vsub.f32 %v644, %v676
        %v709 = vsub.f32 %v645, %v677
        %v710 = vsub.f32 %v646, %v678
        %v711 = vsub.f32 %v647, %v679
        %v712 = vsub.f32 %v648, %v680
        %v713 = vsub.f32 %v649, %v681
        %v714 = vsub.f32 %v650, %v682
        %v715 = vsub.f32 %v651, %v683
        %v716 = vsub.f32 %v652, %v684
        %v717 = vsub.f32 %v653, %v685
        %v718 = vsub.f32 %v654, %v686
        %v719 = vsub.f32 %v655, %v687
        %v720 = vsub.f32 %v656, %v688
        %v721 = vsub.f32 %v657, %v689
        %v722 = vsub.f32 %v658, %v690
        %v723 = vsub.f32 %v659, %v691
        %v724 = vsub.f32 %v660, %v692
        %v725 = vsub.f32 %v661, %v693
        %v726 = vlaneseq
        %v727 = vshrl.u32 %v726, 7
        %v728 = vadd.s32 %v727, 8
        %v729 = vadd.s32 %v727, 16
        %v730 = vadd.s32 %v727, 24
        %v731 = vadd.s32 %v727, 32
        %v732 = vadd.s32 %v727, 40
        %v733 = vadd.s32 %v727, 48
        %v734 = vadd.s32 %v727, 56
        %v735 = vadd.s32 %v727, 64
        %v736 = vadd.s32 %v727, 72
        %v737 = vadd.s32 %v727, 80
        %v738 = vadd.s32 %v727, 88
        %v739 = vadd.s32 %v727, 96
        %v740 = vadd.s32 %v727, 104
        %v741 = vadd.s32 %v727, 112
        %v742 = vadd.s32 %v727, 120
        %v743 = vmin.f32 %v694, %v698
        %v744 = vmin.f32 %v696, %v700
        %v745 = vmin.f32 %v743, %v702
        %v746 = vmin.f32 %v744, %v704
        %v747 = vmin.f32 %v745, %v706
        %v748 = vmin.f32 %v746, %v708
        %v749 = vmin.f32 %v747, %v710
        %v750 = vmin.f32 %v748, %v712
        %v751 = vmin.f32 %v749, %v714
        %v752 = vmin.f32 %v750, %v716
        %v753 = vmin.f32 %v751, %v718
        %v754 = vmin.f32 %v752, %v720
        %v755 = vmin.f32 %v753, %v722
        %v756 = vmin.f32 %v754, %v724
        %v757 = vmin.f32 %v755, %v756
        %v758 = vrot.slane %v757, 4
        %v759 = vmin.f32 %v757, %v758
        %v760 = vrot.slane %v759, 2
        %v761 = vmin.f32 %v759, %v760
        %v762 = vrot.slane %v761, 1
        %v763 = vmin.f32 %v761, %v762
        %v764 = vmin.f32 %v695, %v699
        %v765 = vmin.f32 %v697, %v701
        %v766 = vmin.f32 %v764, %v703
        %v767 = vmin.f32 %v765, %v705
        %v768 = vmin.f32 %v766, %v707
        %v769 = vmin.f32 %v767, %v709
        %v770 = vmin.f32 %v768, %v711
        %v771 = vmin.f32 %v769, %v713
        %v772 = vmin.f32 %v770, %v715
        %v773 = vmin.f32 %v771, %v717
        %v774 = vmin.f32 %v772, %v719
        %v775 = vmin.f32 %v773, %v721
        %v776 = vmin.f32 %v774, %v723
        %v777 = vmin.f32 %v775, %v725
        %v778 = vmin.f32 %v776, %v777
        %v779 = vrot.slane %v778, 4
        %v780 = vmin.f32 %v778, %v779
        %v781 = vrot.slane %v780, 2
        %v782 = vmin.f32 %v780, %v781
        %v783 = vrot.slane %v782, 1
        %v784 = vmin.f32 %v782, %v783
        %vm785 = vcmp.eq.f32.partialorder %v694, %v763
        %vm786 = vcmp.eq.f32.partialorder %v695, %v784
        %vm787 = vcmp.eq.f32.partialorder %v696, %v763
        %vm788 = vcmp.eq.f32.partialorder %v697, %v784
        %vm789 = vcmp.eq.f32.partialorder %v698, %v763
        %vm790 = vcmp.eq.f32.partialorder %v699, %v784
        %vm791 = vcmp.eq.f32.partialorder %v700, %v763
        %vm792 = vcmp.eq.f32.partialorder %v701, %v784
        %vm793 = vcmp.eq.f32.partialorder %v702, %v763
        %vm794 = vcmp.eq.f32.partialorder %v703, %v784
        %vm795 = vcmp.eq.f32.partialorder %v704, %v763
        %vm796 = vcmp.eq.f32.partialorder %v705, %v784
        %vm797 = vcmp.eq.f32.partialorder %v706, %v763
        %vm798 = vcmp.eq.f32.partialorder %v707, %v784
        %vm799 = vcmp.eq.f32.partialorder %v708, %v763
        %vm800 = vcmp.eq.f32.partialorder %v709, %v784
        %vm801 = vcmp.eq.f32.partialorder %v710, %v763
        %vm802 = vcmp.eq.f32.partialorder %v711, %v784
        %vm803 = vcmp.eq.f32.partialorder %v712, %v763
        %vm804 = vcmp.eq.f32.partialorder %v713, %v784
        %vm805 = vcmp.eq.f32.partialorder %v714, %v763
        %vm806 = vcmp.eq.f32.partialorder %v715, %v784
        %vm807 = vcmp.eq.f32.partialorder %v716, %v763
        %vm808 = vcmp.eq.f32.partialorder %v717, %v784
        %vm809 = vcmp.eq.f32.partialorder %v718, %v763
        %vm810 = vcmp.eq.f32.partialorder %v719, %v784
        %vm811 = vcmp.eq.f32.partialorder %v720, %v763
        %vm812 = vcmp.eq.f32.partialorder %v721, %v784
        %vm813 = vcmp.eq.f32.partialorder %v722, %v763
        %vm814 = vcmp.eq.f32.partialorder %v723, %v784
        %vm815 = vcmp.eq.f32.partialorder %v724, %v763
        %vm816 = vcmp.eq.f32.partialorder %v725, %v784
        %v817 = vsel %vm785, %v727, 128
        %v818 = vsel %vm786, %v727, 128
        %v819 = vsel %vm787, %v728, 128
        %v820 = vsel %vm788, %v728, 128
        %v821 = vsel %vm789, %v729, 128
        %v822 = vsel %vm790, %v729, 128
        %v823 = vsel %vm791, %v730, 128
        %v824 = vsel %vm792, %v730, 128
        %v825 = vsel %vm793, %v731, 128
        %v826 = vsel %vm794, %v731, 128
        %v827 = vsel %vm795, %v732, 128
        %v828 = vsel %vm796, %v732, 128
        %v829 = vsel %vm797, %v733, 128
        %v830 = vsel %vm798, %v733, 128
        %v831 = vsel %vm799, %v734, 128
        %v832 = vsel %vm800, %v734, 128
        %v833 = vsel %vm801, %v735, 128
        %v834 = vsel %vm802, %v735, 128
        %v835 = vsel %vm803, %v736, 128
        %v836 = vsel %vm804, %v736, 128
        %v837 = vsel %vm805, %v737, 128
        %v838 = vsel %vm806, %v737, 128
        %v839 = vsel %vm807, %v738, 128
        %v840 = vsel %vm808, %v738, 128
        %v841 = vsel %vm809, %v739, 128
        %v842 = vsel %vm810, %v739, 128
        %v843 = vsel %vm811, %v740, 128
        %v844 = vsel %vm812, %v740, 128
        %v845 = vsel %vm813, %v741, 128
        %v846 = vsel %vm814, %v741, 128
        %v847 = vsel %vm815, %v742, 128
        %v848 = vsel %vm816, %v742, 128
        %vm849 = vcmp.lt.s32.totalorder %v817, %v821
        %v850 = vsel %vm849, %v817, %v821
        %vm851 = vcmp.lt.s32.totalorder %v819, %v823
        %v852 = vsel %vm851, %v819, %v823
        %vm853 = vcmp.lt.s32.totalorder %v850, %v825
        %v854 = vsel %vm853, %v850, %v825
        %vm855 = vcmp.lt.s32.totalorder %v852, %v827
        %v856 = vsel %vm855, %v852, %v827
        %vm857 = vcmp.lt.s32.totalorder %v854, %v829
        %v858 = vsel %vm857, %v854, %v829
        %vm859 = vcmp.lt.s32.totalorder %v856, %v831
        %v860 = vsel %vm859, %v856, %v831
        %vm861 = vcmp.lt.s32.totalorder %v858, %v833
        %v862 = vsel %vm861, %v858, %v833
        %vm863 = vcmp.lt.s32.totalorder %v860, %v835
        %v864 = vsel %vm863, %v860, %v835
        %vm865 = vcmp.lt.s32.totalorder %v862, %v837
        %v866 = vsel %vm865, %v862, %v837
        %vm867 = vcmp.lt.s32.totalorder %v864, %v839
        %v868 = vsel %vm867, %v864, %v839
        %vm869 = vcmp.lt.s32.totalorder %v866, %v841
        %v870 = vsel %vm869, %v866, %v841
        %vm871 = vcmp.lt.s32.totalorder %v868, %v843
        %v872 = vsel %vm871, %v868, %v843
        %vm873 = vcmp.lt.s32.totalorder %v870, %v845
        %v874 = vsel %vm873, %v870, %v845
        %vm875 = vcmp.lt.s32.totalorder %v872, %v847
        %v876 = vsel %vm875, %v872, %v847
        %vm877 = vcmp.lt.s32.totalorder %v874, %v876
        %v878 = vsel %vm877, %v874, %v876
        %v879 = vrot.slane %v878, 4
        %vm880 = vcmp.lt.s32.totalorder %v878, %v879
        %v881 = vsel %vm880, %v878, %v879
        %v882 = vrot.slane %v881, 2
        %vm883 = vcmp.lt.s32.totalorder %v881, %v882
        %v884 = vsel %vm883, %v881, %v882
        %v885 = vrot.slane %v884, 1
        %vm886 = vcmp.lt.s32.totalorder %v884, %v885
        %v887 = vsel %vm886, %v884, %v885
        %vm888 = vcmp.lt.s32.totalorder %v818, %v822
        %v889 = vsel %vm888, %v818, %v822
        %vm890 = vcmp.lt.s32.totalorder %v820, %v824
        %v891 = vsel %vm890, %v820, %v824
        %vm892 = vcmp.lt.s32.totalorder %v889, %v826
        %v893 = vsel %vm892, %v889, %v826
        %vm894 = vcmp.lt.s32.totalorder %v891, %v828
        %v895 = vsel %vm894, %v891, %v828
        %vm896 = vcmp.lt.s32.totalorder %v893, %v830
        %v897 = vsel %vm896, %v893, %v830
        %vm898 = vcmp.lt.s32.totalorder %v895, %v832
        %v899 = vsel %vm898, %v895, %v832
        %vm900 = vcmp.lt.s32.totalorder %v897, %v834
        %v901 = vsel %vm900, %v897, %v834
        %vm902 = vcmp.lt.s32.totalorder %v899, %v836
        %v903 = vsel %vm902, %v899, %v836
        %vm904 = vcmp.lt.s32.totalorder %v901, %v838
        %v905 = vsel %vm904, %v901, %v838
        %vm906 = vcmp.lt.s32.totalorder %v903, %v840
        %v907 = vsel %vm906, %v903, %v840
        %vm908 = vcmp.lt.s32.totalorder %v905, %v842
        %v909 = vsel %vm908, %v905, %v842
        %vm910 = vcmp.lt.s32.totalorder %v907, %v844
        %v911 = vsel %vm910, %v907, %v844
        %vm912 = vcmp.lt.s32.totalorder %v909, %v846
        %v913 = vsel %vm912, %v909, %v846
        %vm914 = vcmp.lt.s32.totalorder %v911, %v848
        %v915 = vsel %vm914, %v911, %v848
        %vm916 = vcmp.lt.s32.totalorder %v913, %v915
        %v917 = vsel %vm916, %v913, %v915
        %v918 = vrot.slane %v917, 4
        %vm919 = vcmp.lt.s32.totalorder %v917, %v918
        %v920 = vsel %vm919, %v917, %v918
        %v921 = vrot.slane %v920, 2
        %vm922 = vcmp.lt.s32.totalorder %v920, %v921
        %v923 = vsel %vm922, %v920, %v921
        %v924 = vrot.slane %v923, 1
        %vm925 = vcmp.lt.s32.totalorder %v923, %v924
        %v926 = vsel %vm925, %v923, %v924
        %vm927 = vcmp.eq.s32.totalorder %v727, %v887
        %vm928 = vcmp.eq.s32.totalorder %v727, %v926
        %vm929 = vcmp.eq.s32.totalorder %v728, %v887
        %vm930 = vcmp.eq.s32.totalorder %v728, %v926
        %vm931 = vcmp.eq.s32.totalorder %v729, %v887
        %vm932 = vcmp.eq.s32.totalorder %v729, %v926
        %vm933 = vcmp.eq.s32.totalorder %v730, %v887
        %vm934 = vcmp.eq.s32.totalorder %v730, %v926
        %vm935 = vcmp.eq.s32.totalorder %v731, %v887
        %vm936 = vcmp.eq.s32.totalorder %v731, %v926
        %vm937 = vcmp.eq.s32.totalorder %v732, %v887
        %vm938 = vcmp.eq.s32.totalorder %v732, %v926
        %vm939 = vcmp.eq.s32.totalorder %v733, %v887
        %vm940 = vcmp.eq.s32.totalorder %v733, %v926
        %vm941 = vcmp.eq.s32.totalorder %v734, %v887
        %vm942 = vcmp.eq.s32.totalorder %v734, %v926
        %vm943 = vcmp.eq.s32.totalorder %v735, %v887
        %vm944 = vcmp.eq.s32.totalorder %v735, %v926
        %vm945 = vcmp.eq.s32.totalorder %v736, %v887
        %vm946 = vcmp.eq.s32.totalorder %v736, %v926
        %vm947 = vcmp.eq.s32.totalorder %v737, %v887
        %vm948 = vcmp.eq.s32.totalorder %v737, %v926
        %vm949 = vcmp.eq.s32.totalorder %v738, %v887
        %vm950 = vcmp.eq.s32.totalorder %v738, %v926
        %vm951 = vcmp.eq.s32.totalorder %v739, %v887
        %vm952 = vcmp.eq.s32.totalorder %v739, %v926
        %vm953 = vcmp.eq.s32.totalorder %v740, %v887
        %vm954 = vcmp.eq.s32.totalorder %v740, %v926
        %vm955 = vcmp.eq.s32.totalorder %v741, %v887
        %vm956 = vcmp.eq.s32.totalorder %v741, %v926
        %vm957 = vcmp.eq.s32.totalorder %v742, %v887
        %vm958 = vcmp.eq.s32.totalorder %v742, %v926
        %v959 = vsel %vm927, inf, %v694
        %v960 = vsel %vm928, inf, %v695
        %v961 = vsel %vm929, inf, %v696
        %v962 = vsel %vm930, inf, %v697
        %v963 = vsel %vm931, inf, %v698
        %v964 = vsel %vm932, inf, %v699
        %v965 = vsel %vm933, inf, %v700
        %v966 = vsel %vm934, inf, %v701
        %v967 = vsel %vm935, inf, %v702
        %v968 = vsel %vm936, inf, %v703
        %v969 = vsel %vm937, inf, %v704
        %v970 = vsel %vm938, inf, %v705
        %v971 = vsel %vm939, inf, %v706
        %v972 = vsel %vm940, inf, %v707
        %v973 = vsel %vm941, inf, %v708
        %v974 = vsel %vm942, inf, %v709
        %v975 = vsel %vm943, inf, %v710
        %v976 = vsel %vm944, inf, %v711
        %v977 = vsel %vm945, inf, %v712
        %v978 = vsel %vm946, inf, %v713
        %v979 = vsel %vm947, inf, %v714
        %v980 = vsel %vm948, inf, %v715
        %v981 = vsel %vm949, inf, %v716
        %v982 = vsel %vm950, inf, %v717
        %v983 = vsel %vm951, inf, %v718
        %v984 = vsel %vm952, inf, %v719
        %v985 = vsel %vm953, inf, %v720
        %v986 = vsel %vm954, inf, %v721
        %v987 = vsel %vm955, inf, %v722
        %v988 = vsel %vm956, inf, %v723
        %v989 = vsel %vm957, inf, %v724
        %v990 = vsel %vm958, inf, %v725
        %v991 = vmin.f32 %v959, %v963
        %v992 = vmin.f32 %v961, %v965
        %v993 = vmin.f32 %v991, %v967
        %v994 = vmin.f32 %v992, %v969
        %v995 = vmin.f32 %v993, %v971
        %v996 = vmin.f32 %v994, %v973
        %v997 = vmin.f32 %v995, %v975
        %v998 = vmin.f32 %v996, %v977
        %v999 = vmin.f32 %v997, %v979
        %v1000 = vmin.f32 %v998, %v981
        %v1001 = vmin.f32 %v999, %v983
        %v1002 = vmin.f32 %v1000, %v985
        %v1003 = vmin.f32 %v1001, %v987
        %v1004 = vmin.f32 %v1002, %v989
        %v1005 = vmin.f32 %v1003, %v1004
        %v1006 = vrot.slane %v1005, 4
        %v1007 = vmin.f32 %v1005, %v1006
        %v1008 = vrot.slane %v1007, 2
        %v1009 = vmin.f32 %v1007, %v1008
        %v1010 = vrot.slane %v1009, 1
        %v1011 = vmin.f32 %v1009, %v1010
        %v1012 = vmin.f32 %v960, %v964
        %v1013 = vmin.f32 %v962, %v966
        %v1014 = vmin.f32 %v1012, %v968
        %v1015 = vmin.f32 %v1013, %v970
        %v1016 = vmin.f32 %v1014, %v972
        %v1017 = vmin.f32 %v1015, %v974
        %v1018 = vmin.f32 %v1016, %v976
        %v1019 = vmin.f32 %v1017, %v978
        %v1020 = vmin.f32 %v1018, %v980
        %v1021 = vmin.f32 %v1019, %v982
        %v1022 = vmin.f32 %v1020, %v984
        %v1023 = vmin.f32 %v1021, %v986
        %v1024 = vmin.f32 %v1022, %v988
        %v1025 = vmin.f32 %v1023, %v990
        %v1026 = vmin.f32 %v1024, %v1025
        %v1027 = vrot.slane %v1026, 4
        %v1028 = vmin.f32 %v1026, %v1027
        %v1029 = vrot.slane %v1028, 2
        %v1030 = vmin.f32 %v1028, %v1029
        %v1031 = vrot.slane %v1030, 1
        %v1032 = vmin.f32 %v1030, %v1031
        %vm1033 = vcmp.eq.f32.partialorder %v959, %v1011
        %vm1034 = vcmp.eq.f32.partialorder %v960, %v1032
        %vm1035 = vcmp.eq.f32.partialorder %v961, %v1011
        %vm1036 = vcmp.eq.f32.partialorder %v962, %v1032
        %vm1037 = vcmp.eq.f32.partialorder %v963, %v1011
        %vm1038 = vcmp.eq.f32.partialorder %v964, %v1032
        %vm1039 = vcmp.eq.f32.partialorder %v965, %v1011
        %vm1040 = vcmp.eq.f32.partialorder %v966, %v1032
        %vm1041 = vcmp.eq.f32.partialorder %v967, %v1011
        %vm1042 = vcmp.eq.f32.partialorder %v968, %v1032
        %vm1043 = vcmp.eq.f32.partialorder %v969, %v1011
        %vm1044 = vcmp.eq.f32.partialorder %v970, %v1032
        %vm1045 = vcmp.eq.f32.partialorder %v971, %v1011
        %vm1046 = vcmp.eq.f32.partialorder %v972, %v1032
        %vm1047 = vcmp.eq.f32.partialorder %v973, %v1011
        %vm1048 = vcmp.eq.f32.partialorder %v974, %v1032
        %vm1049 = vcmp.eq.f32.partialorder %v975, %v1011
        %vm1050 = vcmp.eq.f32.partialorder %v976, %v1032
        %vm1051 = vcmp.eq.f32.partialorder %v977, %v1011
        %vm1052 = vcmp.eq.f32.partialorder %v978, %v1032
        %vm1053 = vcmp.eq.f32.partialorder %v979, %v1011
        %vm1054 = vcmp.eq.f32.partialorder %v980, %v1032
        %vm1055 = vcmp.eq.f32.partialorder %v981, %v1011
        %vm1056 = vcmp.eq.f32.partialorder %v982, %v1032
        %vm1057 = vcmp.eq.f32.partialorder %v983, %v1011
        %vm1058 = vcmp.eq.f32.partialorder %v984, %v1032
        %vm1059 = vcmp.eq.f32.partialorder %v985, %v1011
        %vm1060 = vcmp.eq.f32.partialorder %v986, %v1032
        %vm1061 = vcmp.eq.f32.partialorder %v987, %v1011
        %vm1062 = vcmp.eq.f32.partialorder %v988, %v1032
        %vm1063 = vcmp.eq.f32.partialorder %v989, %v1011
        %vm1064 = vcmp.eq.f32.partialorder %v990, %v1032
        %v1065 = vsel %vm1033, %v727, 128
        %v1066 = vsel %vm1034, %v727, 128
        %v1067 = vsel %vm1035, %v728, 128
        %v1068 = vsel %vm1036, %v728, 128
        %v1069 = vsel %vm1037, %v729, 128
        %v1070 = vsel %vm1038, %v729, 128
        %v1071 = vsel %vm1039, %v730, 128
        %v1072 = vsel %vm1040, %v730, 128
        %v1073 = vsel %vm1041, %v731, 128
        %v1074 = vsel %vm1042, %v731, 128
        %v1075 = vsel %vm1043, %v732, 128
        %v1076 = vsel %vm1044, %v732, 128
        %v1077 = vsel %vm1045, %v733, 128
        %v1078 = vsel %vm1046, %v733, 128
        %v1079 = vsel %vm1047, %v734, 128
        %v1080 = vsel %vm1048, %v734, 128
        %v1081 = vsel %vm1049, %v735, 128
        %v1082 = vsel %vm1050, %v735, 128
        %v1083 = vsel %vm1051, %v736, 128
        %v1084 = vsel %vm1052, %v736, 128
        %v1085 = vsel %vm1053, %v737, 128
        %v1086 = vsel %vm1054, %v737, 128
        %v1087 = vsel %vm1055, %v738, 128
        %v1088 = vsel %vm1056, %v738, 128
        %v1089 = vsel %vm1057, %v739, 128
        %v1090 = vsel %vm1058, %v739, 128
        %v1091 = vsel %vm1059, %v740, 128
        %v1092 = vsel %vm1060, %v740, 128
        %v1093 = vsel %vm1061, %v741, 128
        %v1094 = vsel %vm1062, %v741, 128
        %v1095 = vsel %vm1063, %v742, 128
        %v1096 = vsel %vm1064, %v742, 128
        %vm1097 = vcmp.lt.s32.totalorder %v1065, %v1069
        %v1098 = vsel %vm1097, %v1065, %v1069
        %vm1099 = vcmp.lt.s32.totalorder %v1067, %v1071
        %v1100 = vsel %vm1099, %v1067, %v1071
        %vm1101 = vcmp.lt.s32.totalorder %v1098, %v1073
        %v1102 = vsel %vm1101, %v1098, %v1073
        %vm1103 = vcmp.lt.s32.totalorder %v1100, %v1075
        %v1104 = vsel %vm1103, %v1100, %v1075
        %vm1105 = vcmp.lt.s32.totalorder %v1102, %v1077
        %v1106 = vsel %vm1105, %v1102, %v1077
        %vm1107 = vcmp.lt.s32.totalorder %v1104, %v1079
        %v1108 = vsel %vm1107, %v1104, %v1079
        %vm1109 = vcmp.lt.s32.totalorder %v1106, %v1081
        %v1110 = vsel %vm1109, %v1106, %v1081
        %vm1111 = vcmp.lt.s32.totalorder %v1108, %v1083
        %v1112 = vsel %vm1111, %v1108, %v1083
        %vm1113 = vcmp.lt.s32.totalorder %v1110, %v1085
        %v1114 = vsel %vm1113, %v1110, %v1085
        %vm1115 = vcmp.lt.s32.totalorder %v1112, %v1087
        %v1116 = vsel %vm1115, %v1112, %v1087
        %vm1117 = vcmp.lt.s32.totalorder %v1114, %v1089
        %v1118 = vsel %vm1117, %v1114, %v1089
        %vm1119 = vcmp.lt.s32.totalorder %v1116, %v1091
        %v1120 = vsel %vm1119, %v1116, %v1091
        %vm1121 = vcmp.lt.s32.totalorder %v1118, %v1093
        %v1122 = vsel %vm1121, %v1118, %v1093
        %vm1123 = vcmp.lt.s32.totalorder %v1120, %v1095
        %v1124 = vsel %vm1123, %v1120, %v1095
        %vm1125 = vcmp.lt.s32.totalorder %v1122, %v1124
        %v1126 = vsel %vm1125, %v1122, %v1124
        %v1127 = vrot.slane %v1126, 4
        %vm1128 = vcmp.lt.s32.totalorder %v1126, %v1127
        %v1129 = vsel %vm1128, %v1126, %v1127
        %v1130 = vrot.slane %v1129, 2
        %vm1131 = vcmp.lt.s32.totalorder %v1129, %v1130
        %v1132 = vsel %vm1131, %v1129, %v1130
        %v1133 = vrot.slane %v1132, 1
        %vm1134 = vcmp.lt.s32.totalorder %v1132, %v1133
        %v1135 = vsel %vm1134, %v1132, %v1133
        %vm1136 = vcmp.lt.s32.totalorder %v1066, %v1070
        %v1137 = vsel %vm1136, %v1066, %v1070
        %vm1138 = vcmp.lt.s32.totalorder %v1068, %v1072
        %v1139 = vsel %vm1138, %v1068, %v1072
        %vm1140 = vcmp.lt.s32.totalorder %v1137, %v1074
        %v1141 = vsel %vm1140, %v1137, %v1074
        %vm1142 = vcmp.lt.s32.totalorder %v1139, %v1076
        %v1143 = vsel %vm1142, %v1139, %v1076
        %vm1144 = vcmp.lt.s32.totalorder %v1141, %v1078
        %v1145 = vsel %vm1144, %v1141, %v1078
        %vm1146 = vcmp.lt.s32.totalorder %v1143, %v1080
        %v1147 = vsel %vm1146, %v1143, %v1080
        %vm1148 = vcmp.lt.s32.totalorder %v1145, %v1082
        %v1149 = vsel %vm1148, %v1145, %v1082
        %vm1150 = vcmp.lt.s32.totalorder %v1147, %v1084
        %v1151 = vsel %vm1150, %v1147, %v1084
        %vm1152 = vcmp.lt.s32.totalorder %v1149, %v1086
        %v1153 = vsel %vm1152, %v1149, %v1086
        %vm1154 = vcmp.lt.s32.totalorder %v1151, %v1088
        %v1155 = vsel %vm1154, %v1151, %v1088
        %vm1156 = vcmp.lt.s32.totalorder %v1153, %v1090
        %v1157 = vsel %vm1156, %v1153, %v1090
        %vm1158 = vcmp.lt.s32.totalorder %v1155, %v1092
        %v1159 = vsel %vm1158, %v1155, %v1092
        %vm1160 = vcmp.lt.s32.totalorder %v1157, %v1094
        %v1161 = vsel %vm1160, %v1157, %v1094
        %vm1162 = vcmp.lt.s32.totalorder %v1159, %v1096
        %v1163 = vsel %vm1162, %v1159, %v1096
        %vm1164 = vcmp.lt.s32.totalorder %v1161, %v1163
        %v1165 = vsel %vm1164, %v1161, %v1163
        %v1166 = vrot.slane %v1165, 4
        %vm1167 = vcmp.lt.s32.totalorder %v1165, %v1166
        %v1168 = vsel %vm1167, %v1165, %v1166
        %v1169 = vrot.slane %v1168, 2
        %vm1170 = vcmp.lt.s32.totalorder %v1168, %v1169
        %v1171 = vsel %vm1170, %v1168, %v1169
        %v1172 = vrot.slane %v1171, 1
        %vm1173 = vcmp.lt.s32.totalorder %v1171, %v1172
        %v1174 = vsel %vm1173, %v1171, %v1172
        %vm1175 = vcmp.eq.s32.totalorder %v727, %v1135
        %vm1176 = vcmp.eq.s32.totalorder %v727, %v1174
        %vm1177 = vcmp.eq.s32.totalorder %v728, %v1135
        %vm1178 = vcmp.eq.s32.totalorder %v728, %v1174
        %vm1179 = vcmp.eq.s32.totalorder %v729, %v1135
        %vm1180 = vcmp.eq.s32.totalorder %v729, %v1174
        %vm1181 = vcmp.eq.s32.totalorder %v730, %v1135
        %vm1182 = vcmp.eq.s32.totalorder %v730, %v1174
        %vm1183 = vcmp.eq.s32.totalorder %v731, %v1135
        %vm1184 = vcmp.eq.s32.totalorder %v731, %v1174
        %vm1185 = vcmp.eq.s32.totalorder %v732, %v1135
        %vm1186 = vcmp.eq.s32.totalorder %v732, %v1174
        %vm1187 = vcmp.eq.s32.totalorder %v733, %v1135
        %vm1188 = vcmp.eq.s32.totalorder %v733, %v1174
        %vm1189 = vcmp.eq.s32.totalorder %v734, %v1135
        %vm1190 = vcmp.eq.s32.totalorder %v734, %v1174
        %vm1191 = vcmp.eq.s32.totalorder %v735, %v1135
        %vm1192 = vcmp.eq.s32.totalorder %v735, %v1174
        %vm1193 = vcmp.eq.s32.totalorder %v736, %v1135
        %vm1194 = vcmp.eq.s32.totalorder %v736, %v1174
        %vm1195 = vcmp.eq.s32.totalorder %v737, %v1135
        %vm1196 = vcmp.eq.s32.totalorder %v737, %v1174
        %vm1197 = vcmp.eq.s32.totalorder %v738, %v1135
        %vm1198 = vcmp.eq.s32.totalorder %v738, %v1174
        %vm1199 = vcmp.eq.s32.totalorder %v739, %v1135
        %vm1200 = vcmp.eq.s32.totalorder %v739, %v1174
        %vm1201 = vcmp.eq.s32.totalorder %v740, %v1135
        %vm1202 = vcmp.eq.s32.totalorder %v740, %v1174
        %vm1203 = vcmp.eq.s32.totalorder %v741, %v1135
        %vm1204 = vcmp.eq.s32.totalorder %v741, %v1174
        %vm1205 = vcmp.eq.s32.totalorder %v742, %v1135
        %vm1206 = vcmp.eq.s32.totalorder %v742, %v1174
        %v1207 = vsel %vm1175, inf, %v959
        %v1208 = vsel %vm1176, inf, %v960
        %v1209 = vsel %vm1177, inf, %v961
        %v1210 = vsel %vm1178, inf, %v962
        %v1211 = vsel %vm1179, inf, %v963
        %v1212 = vsel %vm1180, inf, %v964
        %v1213 = vsel %vm1181, inf, %v965
        %v1214 = vsel %vm1182, inf, %v966
        %v1215 = vsel %vm1183, inf, %v967
        %v1216 = vsel %vm1184, inf, %v968
        %v1217 = vsel %vm1185, inf, %v969
        %v1218 = vsel %vm1186, inf, %v970
        %v1219 = vsel %vm1187, inf, %v971
        %v1220 = vsel %vm1188, inf, %v972
        %v1221 = vsel %vm1189, inf, %v973
        %v1222 = vsel %vm1190, inf, %v974
        %v1223 = vsel %vm1191, inf, %v975
        %v1224 = vsel %vm1192, inf, %v976
        %v1225 = vsel %vm1193, inf, %v977
        %v1226 = vsel %vm1194, inf, %v978
        %v1227 = vsel %vm1195, inf, %v979
        %v1228 = vsel %vm1196, inf, %v980
        %v1229 = vsel %vm1197, inf, %v981
        %v1230 = vsel %vm1198, inf, %v982
        %v1231 = vsel %vm1199, inf, %v983
        %v1232 = vsel %vm1200, inf, %v984
        %v1233 = vsel %vm1201, inf, %v985
        %v1234 = vsel %vm1202, inf, %v986
        %v1235 = vsel %vm1203, inf, %v987
        %v1236 = vsel %vm1204, inf, %v988
        %v1237 = vsel %vm1205, inf, %v989
        %v1238 = vsel %vm1206, inf, %v990
        %v1239 = vmin.f32 %v1207, %v1211
        %v1240 = vmin.f32 %v1209, %v1213
        %v1241 = vmin.f32 %v1239, %v1215
        %v1242 = vmin.f32 %v1240, %v1217
        %v1243 = vmin.f32 %v1241, %v1219
        %v1244 = vmin.f32 %v1242, %v1221
        %v1245 = vmin.f32 %v1243, %v1223
        %v1246 = vmin.f32 %v1244, %v1225
        %v1247 = vmin.f32 %v1245, %v1227
        %v1248 = vmin.f32 %v1246, %v1229
        %v1249 = vmin.f32 %v1247, %v1231
        %v1250 = vmin.f32 %v1248, %v1233
        %v1251 = vmin.f32 %v1249, %v1235
        %v1252 = vmin.f32 %v1250, %v1237
        %v1253 = vmin.f32 %v1251, %v1252
        %v1254 = vrot.slane %v1253, 4
        %v1255 = vmin.f32 %v1253, %v1254
        %v1256 = vrot.slane %v1255, 2
        %v1257 = vmin.f32 %v1255, %v1256
        %v1258 = vrot.slane %v1257, 1
        %v1259 = vmin.f32 %v1257, %v1258
        %v1260 = vmin.f32 %v1208, %v1212
        %v1261 = vmin.f32 %v1210, %v1214
        %v1262 = vmin.f32 %v1260, %v1216
        %v1263 = vmin.f32 %v1261, %v1218
        %v1264 = vmin.f32 %v1262, %v1220
        %v1265 = vmin.f32 %v1263, %v1222
        %v1266 = vmin.f32 %v1264, %v1224
        %v1267 = vmin.f32 %v1265, %v1226
        %v1268 = vmin.f32 %v1266, %v1228
        %v1269 = vmin.f32 %v1267, %v1230
        %v1270 = vmin.f32 %v1268, %v1232
        %v1271 = vmin.f32 %v1269, %v1234
        %v1272 = vmin.f32 %v1270, %v1236
        %v1273 = vmin.f32 %v1271, %v1238
        %v1274 = vmin.f32 %v1272, %v1273
        %v1275 = vrot.slane %v1274, 4
        %v1276 = vmin.f32 %v1274, %v1275
        %v1277 = vrot.slane %v1276, 2
        %v1278 = vmin.f32 %v1276, %v1277
        %v1279 = vrot.slane %v1278, 1
        %v1280 = vmin.f32 %v1278, %v1279
        %vm1281 = vcmp.eq.f32.partialorder %v1207, %v1259
        %vm1282 = vcmp.eq.f32.partialorder %v1208, %v1280
        %vm1283 = vcmp.eq.f32.partialorder %v1209, %v1259
        %vm1284 = vcmp.eq.f32.partialorder %v1210, %v1280
        %vm1285 = vcmp.eq.f32.partialorder %v1211, %v1259
        %vm1286 = vcmp.eq.f32.partialorder %v1212, %v1280
        %vm1287 = vcmp.eq.f32.partialorder %v1213, %v1259
        %vm1288 = vcmp.eq.f32.partialorder %v1214, %v1280
        %vm1289 = vcmp.eq.f32.partialorder %v1215, %v1259
        %vm1290 = vcmp.eq.f32.partialorder %v1216, %v1280
        %vm1291 = vcmp.eq.f32.partialorder %v1217, %v1259
        %vm1292 = vcmp.eq.f32.partialorder %v1218, %v1280
        %vm1293 = vcmp.eq.f32.partialorder %v1219, %v1259
        %vm1294 = vcmp.eq.f32.partialorder %v1220, %v1280
        %vm1295 = vcmp.eq.f32.partialorder %v1221, %v1259
        %vm1296 = vcmp.eq.f32.partialorder %v1222, %v1280
        %vm1297 = vcmp.eq.f32.partialorder %v1223, %v1259
        %vm1298 = vcmp.eq.f32.partialorder %v1224, %v1280
        %vm1299 = vcmp.eq.f32.partialorder %v1225, %v1259
        %vm1300 = vcmp.eq.f32.partialorder %v1226, %v1280
        %vm1301 = vcmp.eq.f32.partialorder %v1227, %v1259
        %vm1302 = vcmp.eq.f32.partialorder %v1228, %v1280
        %vm1303 = vcmp.eq.f32.partialorder %v1229, %v1259
        %vm1304 = vcmp.eq.f32.partialorder %v1230, %v1280
        %vm1305 = vcmp.eq.f32.partialorder %v1231, %v1259
        %vm1306 = vcmp.eq.f32.partialorder %v1232, %v1280
        %vm1307 = vcmp.eq.f32.partialorder %v1233, %v1259
        %vm1308 = vcmp.eq.f32.partialorder %v1234, %v1280
        %vm1309 = vcmp.eq.f32.partialorder %v1235, %v1259
        %vm1310 = vcmp.eq.f32.partialorder %v1236, %v1280
        %vm1311 = vcmp.eq.f32.partialorder %v1237, %v1259
        %vm1312 = vcmp.eq.f32.partialorder %v1238, %v1280
        %v1313 = vsel %vm1281, %v727, 128
        %v1314 = vsel %vm1282, %v727, 128
        %v1315 = vsel %vm1283, %v728, 128
        %v1316 = vsel %vm1284, %v728, 128
        %v1317 = vsel %vm1285, %v729, 128
        %v1318 = vsel %vm1286, %v729, 128
        %v1319 = vsel %vm1287, %v730, 128
        %v1320 = vsel %vm1288, %v730, 128
        %v1321 = vsel %vm1289, %v731, 128
        %v1322 = vsel %vm1290, %v731, 128
        %v1323 = vsel %vm1291, %v732, 128
        %v1324 = vsel %vm1292, %v732, 128
        %v1325 = vsel %vm1293, %v733, 128
        %v1326 = vsel %vm1294, %v733, 128
        %v1327 = vsel %vm1295, %v734, 128
        %v1328 = vsel %vm1296, %v734, 128
        %v1329 = vsel %vm1297, %v735, 128
        %v1330 = vsel %vm1298, %v735, 128
        %v1331 = vsel %vm1299, %v736, 128
        %v1332 = vsel %vm1300, %v736, 128
        %v1333 = vsel %vm1301, %v737, 128
        %v1334 = vsel %vm1302, %v737, 128
        %v1335 = vsel %vm1303, %v738, 128
        %v1336 = vsel %vm1304, %v738, 128
        %v1337 = vsel %vm1305, %v739, 128
        %v1338 = vsel %vm1306, %v739, 128
        %v1339 = vsel %vm1307, %v740, 128
        %v1340 = vsel %vm1308, %v740, 128
        %v1341 = vsel %vm1309, %v741, 128
        %v1342 = vsel %vm1310, %v741, 128
        %v1343 = vsel %vm1311, %v742, 128
        %v1344 = vsel %vm1312, %v742, 128
        %vm1345 = vcmp.lt.s32.totalorder %v1313, %v1317
        %v1346 = vsel %vm1345, %v1313, %v1317
        %vm1347 = vcmp.lt.s32.totalorder %v1315, %v1319
        %v1348 = vsel %vm1347, %v1315, %v1319
        %vm1349 = vcmp.lt.s32.totalorder %v1346, %v1321
        %v1350 = vsel %vm1349, %v1346, %v1321
        %vm1351 = vcmp.lt.s32.totalorder %v1348, %v1323
        %v1352 = vsel %vm1351, %v1348, %v1323
        %vm1353 = vcmp.lt.s32.totalorder %v1350, %v1325
        %v1354 = vsel %vm1353, %v1350, %v1325
        %vm1355 = vcmp.lt.s32.totalorder %v1352, %v1327
        %v1356 = vsel %vm1355, %v1352, %v1327
        %vm1357 = vcmp.lt.s32.totalorder %v1354, %v1329
        %v1358 = vsel %vm1357, %v1354, %v1329
        %vm1359 = vcmp.lt.s32.totalorder %v1356, %v1331
        %v1360 = vsel %vm1359, %v1356, %v1331
        %vm1361 = vcmp.lt.s32.totalorder %v1358, %v1333
        %v1362 = vsel %vm1361, %v1358, %v1333
        %vm1363 = vcmp.lt.s32.totalorder %v1360, %v1335
        %v1364 = vsel %vm1363, %v1360, %v1335
        %vm1365 = vcmp.lt.s32.totalorder %v1362, %v1337
        %v1366 = vsel %vm1365, %v1362, %v1337
        %vm1367 = vcmp.lt.s32.totalorder %v1364, %v1339
        %v1368 = vsel %vm1367, %v1364, %v1339
        %vm1369 = vcmp.lt.s32.totalorder %v1366, %v1341
        %v1370 = vsel %vm1369, %v1366, %v1341
        %vm1371 = vcmp.lt.s32.totalorder %v1368, %v1343
        %v1372 = vsel %vm1371, %v1368, %v1343
        %vm1373 = vcmp.lt.s32.totalorder %v1370, %v1372
        %v1374 = vsel %vm1373, %v1370, %v1372
        %v1375 = vrot.slane %v1374, 4
        %vm1376 = vcmp.lt.s32.totalorder %v1374, %v1375
        %v1377 = vsel %vm1376, %v1374, %v1375
        %v1378 = vrot.slane %v1377, 2
        %vm1379 = vcmp.lt.s32.totalorder %v1377, %v1378
        %v1380 = vsel %vm1379, %v1377, %v1378
        %v1381 = vrot.slane %v1380, 1
        %vm1382 = vcmp.lt.s32.totalorder %v1380, %v1381
        %v1383 = vsel %vm1382, %v1380, %v1381
        %vm1384 = vcmp.lt.s32.totalorder %v1314, %v1318
        %v1385 = vsel %vm1384, %v1314, %v1318
        %vm1386 = vcmp.lt.s32.totalorder %v1316, %v1320
        %v1387 = vsel %vm1386, %v1316, %v1320
        %vm1388 = vcmp.lt.s32.totalorder %v1385, %v1322
        %v1389 = vsel %vm1388, %v1385, %v1322
        %vm1390 = vcmp.lt.s32.totalorder %v1387, %v1324
        %v1391 = vsel %vm1390, %v1387, %v1324
        %vm1392 = vcmp.lt.s32.totalorder %v1389, %v1326
        %v1393 = vsel %vm1392, %v1389, %v1326
        %vm1394 = vcmp.lt.s32.totalorder %v1391, %v1328
        %v1395 = vsel %vm1394, %v1391, %v1328
        %vm1396 = vcmp.lt.s32.totalorder %v1393, %v1330
        %v1397 = vsel %vm1396, %v1393, %v1330
        %vm1398 = vcmp.lt.s32.totalorder %v1395, %v1332
        %v1399 = vsel %vm1398, %v1395, %v1332
        %vm1400 = vcmp.lt.s32.totalorder %v1397, %v1334
        %v1401 = vsel %vm1400, %v1397, %v1334
        %vm1402 = vcmp.lt.s32.totalorder %v1399, %v1336
        %v1403 = vsel %vm1402, %v1399, %v1336
        %vm1404 = vcmp.lt.s32.totalorder %v1401, %v1338
        %v1405 = vsel %vm1404, %v1401, %v1338
        %vm1406 = vcmp.lt.s32.totalorder %v1403, %v1340
        %v1407 = vsel %vm1406, %v1403, %v1340
        %vm1408 = vcmp.lt.s32.totalorder %v1405, %v1342
        %v1409 = vsel %vm1408, %v1405, %v1342
        %vm1410 = vcmp.lt.s32.totalorder %v1407, %v1344
        %v1411 = vsel %vm1410, %v1407, %v1344
        %vm1412 = vcmp.lt.s32.totalorder %v1409, %v1411
        %v1413 = vsel %vm1412, %v1409, %v1411
        %v1414 = vrot.slane %v1413, 4
        %vm1415 = vcmp.lt.s32.totalorder %v1413, %v1414
        %v1416 = vsel %vm1415, %v1413, %v1414
        %v1417 = vrot.slane %v1416, 2
        %vm1418 = vcmp.lt.s32.totalorder %v1416, %v1417
        %v1419 = vsel %vm1418, %v1416, %v1417
        %v1420 = vrot.slane %v1419, 1
        %vm1421 = vcmp.lt.s32.totalorder %v1419, %v1420
        %v1422 = vsel %vm1421, %v1419, %v1420
        %vm1423 = vcmp.eq.s32.totalorder %v727, %v1383
        %vm1424 = vcmp.eq.s32.totalorder %v727, %v1422
        %vm1425 = vcmp.eq.s32.totalorder %v728, %v1383
        %vm1426 = vcmp.eq.s32.totalorder %v728, %v1422
        %vm1427 = vcmp.eq.s32.totalorder %v729, %v1383
        %vm1428 = vcmp.eq.s32.totalorder %v729, %v1422
        %vm1429 = vcmp.eq.s32.totalorder %v730, %v1383
        %vm1430 = vcmp.eq.s32.totalorder %v730, %v1422
        %vm1431 = vcmp.eq.s32.totalorder %v731, %v1383
        %vm1432 = vcmp.eq.s32.totalorder %v731, %v1422
        %vm1433 = vcmp.eq.s32.totalorder %v732, %v1383
        %vm1434 = vcmp.eq.s32.totalorder %v732, %v1422
        %vm1435 = vcmp.eq.s32.totalorder %v733, %v1383
        %vm1436 = vcmp.eq.s32.totalorder %v733, %v1422
        %vm1437 = vcmp.eq.s32.totalorder %v734, %v1383
        %vm1438 = vcmp.eq.s32.totalorder %v734, %v1422
        %vm1439 = vcmp.eq.s32.totalorder %v735, %v1383
        %vm1440 = vcmp.eq.s32.totalorder %v735, %v1422
        %vm1441 = vcmp.eq.s32.totalorder %v736, %v1383
        %vm1442 = vcmp.eq.s32.totalorder %v736, %v1422
        %vm1443 = vcmp.eq.s32.totalorder %v737, %v1383
        %vm1444 = vcmp.eq.s32.totalorder %v737, %v1422
        %vm1445 = vcmp.eq.s32.totalorder %v738, %v1383
        %vm1446 = vcmp.eq.s32.totalorder %v738, %v1422
        %vm1447 = vcmp.eq.s32.totalorder %v739, %v1383
        %vm1448 = vcmp.eq.s32.totalorder %v739, %v1422
        %vm1449 = vcmp.eq.s32.totalorder %v740, %v1383
        %vm1450 = vcmp.eq.s32.totalorder %v740, %v1422
        %vm1451 = vcmp.eq.s32.totalorder %v741, %v1383
        %vm1452 = vcmp.eq.s32.totalorder %v741, %v1422
        %vm1453 = vcmp.eq.s32.totalorder %v742, %v1383
        %vm1454 = vcmp.eq.s32.totalorder %v742, %v1422
        %v1455 = vsel %vm1423, inf, %v1207
        %v1456 = vsel %vm1424, inf, %v1208
        %v1457 = vsel %vm1425, inf, %v1209
        %v1458 = vsel %vm1426, inf, %v1210
        %v1459 = vsel %vm1427, inf, %v1211
        %v1460 = vsel %vm1428, inf, %v1212
        %v1461 = vsel %vm1429, inf, %v1213
        %v1462 = vsel %vm1430, inf, %v1214
        %v1463 = vsel %vm1431, inf, %v1215
        %v1464 = vsel %vm1432, inf, %v1216
        %v1465 = vsel %vm1433, inf, %v1217
        %v1466 = vsel %vm1434, inf, %v1218
        %v1467 = vsel %vm1435, inf, %v1219
        %v1468 = vsel %vm1436, inf, %v1220
        %v1469 = vsel %vm1437, inf, %v1221
        %v1470 = vsel %vm1438, inf, %v1222
        %v1471 = vsel %vm1439, inf, %v1223
        %v1472 = vsel %vm1440, inf, %v1224
        %v1473 = vsel %vm1441, inf, %v1225
        %v1474 = vsel %vm1442, inf, %v1226
        %v1475 = vsel %vm1443, inf, %v1227
        %v1476 = vsel %vm1444, inf, %v1228
        %v1477 = vsel %vm1445, inf, %v1229
        %v1478 = vsel %vm1446, inf, %v1230
        %v1479 = vsel %vm1447, inf, %v1231
        %v1480 = vsel %vm1448, inf, %v1232
        %v1481 = vsel %vm1449, inf, %v1233
        %v1482 = vsel %vm1450, inf, %v1234
        %v1483 = vsel %vm1451, inf, %v1235
        %v1484 = vsel %vm1452, inf, %v1236
        %v1485 = vsel %vm1453, inf, %v1237
        %v1486 = vsel %vm1454, inf, %v1238
        %v1487 = vmin.f32 %v1455, %v1459
        %v1488 = vmin.f32 %v1457, %v1461
        %v1489 = vmin.f32 %v1487, %v1463
        %v1490 = vmin.f32 %v1488, %v1465
        %v1491 = vmin.f32 %v1489, %v1467
        %v1492 = vmin.f32 %v1490, %v1469
        %v1493 = vmin.f32 %v1491, %v1471
        %v1494 = vmin.f32 %v1492, %v1473
        %v1495 = vmin.f32 %v1493, %v1475
        %v1496 = vmin.f32 %v1494, %v1477
        %v1497 = vmin.f32 %v1495, %v1479
        %v1498 = vmin.f32 %v1496, %v1481
        %v1499 = vmin.f32 %v1497, %v1483
        %v1500 = vmin.f32 %v1498, %v1485
        %v1501 = vmin.f32 %v1499, %v1500
        %v1502 = vrot.slane %v1501, 4
        %v1503 = vmin.f32 %v1501, %v1502
        %v1504 = vrot.slane %v1503, 2
        %v1505 = vmin.f32 %v1503, %v1504
        %v1506 = vrot.slane %v1505, 1
        %v1507 = vmin.f32 %v1505, %v1506
        %v1508 = vmin.f32 %v1456, %v1460
        %v1509 = vmin.f32 %v1458, %v1462
        %v1510 = vmin.f32 %v1508, %v1464
        %v1511 = vmin.f32 %v1509, %v1466
        %v1512 = vmin.f32 %v1510, %v1468
        %v1513 = vmin.f32 %v1511, %v1470
        %v1514 = vmin.f32 %v1512, %v1472
        %v1515 = vmin.f32 %v1513, %v1474
        %v1516 = vmin.f32 %v1514, %v1476
        %v1517 = vmin.f32 %v1515, %v1478
        %v1518 = vmin.f32 %v1516, %v1480
        %v1519 = vmin.f32 %v1517, %v1482
        %v1520 = vmin.f32 %v1518, %v1484
        %v1521 = vmin.f32 %v1519, %v1486
        %v1522 = vmin.f32 %v1520, %v1521
        %v1523 = vrot.slane %v1522, 4
        %v1524 = vmin.f32 %v1522, %v1523
        %v1525 = vrot.slane %v1524, 2
        %v1526 = vmin.f32 %v1524, %v1525
        %v1527 = vrot.slane %v1526, 1
        %v1528 = vmin.f32 %v1526, %v1527
        %vm1529 = vcmp.eq.f32.partialorder %v1455, %v1507
        %vm1530 = vcmp.eq.f32.partialorder %v1456, %v1528
        %vm1531 = vcmp.eq.f32.partialorder %v1457, %v1507
        %vm1532 = vcmp.eq.f32.partialorder %v1458, %v1528
        %vm1533 = vcmp.eq.f32.partialorder %v1459, %v1507
        %vm1534 = vcmp.eq.f32.partialorder %v1460, %v1528
        %vm1535 = vcmp.eq.f32.partialorder %v1461, %v1507
        %vm1536 = vcmp.eq.f32.partialorder %v1462, %v1528
        %vm1537 = vcmp.eq.f32.partialorder %v1463, %v1507
        %vm1538 = vcmp.eq.f32.partialorder %v1464, %v1528
        %vm1539 = vcmp.eq.f32.partialorder %v1465, %v1507
        %vm1540 = vcmp.eq.f32.partialorder %v1466, %v1528
        %vm1541 = vcmp.eq.f32.partialorder %v1467, %v1507
        %vm1542 = vcmp.eq.f32.partialorder %v1468, %v1528
        %vm1543 = vcmp.eq.f32.partialorder %v1469, %v1507
        %vm1544 = vcmp.eq.f32.partialorder %v1470, %v1528
        %vm1545 = vcmp.eq.f32.partialorder %v1471, %v1507
        %vm1546 = vcmp.eq.f32.partialorder %v1472, %v1528
        %vm1547 = vcmp.eq.f32.partialorder %v1473, %v1507
        %vm1548 = vcmp.eq.f32.partialorder %v1474, %v1528
        %vm1549 = vcmp.eq.f32.partialorder %v1475, %v1507
        %vm1550 = vcmp.eq.f32.partialorder %v1476, %v1528
        %vm1551 = vcmp.eq.f32.partialorder %v1477, %v1507
        %vm1552 = vcmp.eq.f32.partialorder %v1478, %v1528
        %vm1553 = vcmp.eq.f32.partialorder %v1479, %v1507
        %vm1554 = vcmp.eq.f32.partialorder %v1480, %v1528
        %vm1555 = vcmp.eq.f32.partialorder %v1481, %v1507
        %vm1556 = vcmp.eq.f32.partialorder %v1482, %v1528
        %vm1557 = vcmp.eq.f32.partialorder %v1483, %v1507
        %vm1558 = vcmp.eq.f32.partialorder %v1484, %v1528
        %vm1559 = vcmp.eq.f32.partialorder %v1485, %v1507
        %vm1560 = vcmp.eq.f32.partialorder %v1486, %v1528
        %v1561 = vsel %vm1529, %v727, 128
        %v1562 = vsel %vm1530, %v727, 128
        %v1563 = vsel %vm1531, %v728, 128
        %v1564 = vsel %vm1532, %v728, 128
        %v1565 = vsel %vm1533, %v729, 128
        %v1566 = vsel %vm1534, %v729, 128
        %v1567 = vsel %vm1535, %v730, 128
        %v1568 = vsel %vm1536, %v730, 128
        %v1569 = vsel %vm1537, %v731, 128
        %v1570 = vsel %vm1538, %v731, 128
        %v1571 = vsel %vm1539, %v732, 128
        %v1572 = vsel %vm1540, %v732, 128
        %v1573 = vsel %vm1541, %v733, 128
        %v1574 = vsel %vm1542, %v733, 128
        %v1575 = vsel %vm1543, %v734, 128
        %v1576 = vsel %vm1544, %v734, 128
        %v1577 = vsel %vm1545, %v735, 128
        %v1578 = vsel %vm1546, %v735, 128
        %v1579 = vsel %vm1547, %v736, 128
        %v1580 = vsel %vm1548, %v736, 128
        %v1581 = vsel %vm1549, %v737, 128
        %v1582 = vsel %vm1550, %v737, 128
        %v1583 = vsel %vm1551, %v738, 128
        %v1584 = vsel %vm1552, %v738, 128
        %v1585 = vsel %vm1553, %v739, 128
        %v1586 = vsel %vm1554, %v739, 128
        %v1587 = vsel %vm1555, %v740, 128
        %v1588 = vsel %vm1556, %v740, 128
        %v1589 = vsel %vm1557, %v741, 128
        %v1590 = vsel %vm1558, %v741, 128
        %v1591 = vsel %vm1559, %v742, 128
        %v1592 = vsel %vm1560, %v742, 128
        %vm1593 = vcmp.lt.s32.totalorder %v1561, %v1565
        %v1594 = vsel %vm1593, %v1561, %v1565
        %vm1595 = vcmp.lt.s32.totalorder %v1563, %v1567
        %v1596 = vsel %vm1595, %v1563, %v1567
        %vm1597 = vcmp.lt.s32.totalorder %v1594, %v1569
        %v1598 = vsel %vm1597, %v1594, %v1569
        %vm1599 = vcmp.lt.s32.totalorder %v1596, %v1571
        %v1600 = vsel %vm1599, %v1596, %v1571
        %vm1601 = vcmp.lt.s32.totalorder %v1598, %v1573
        %v1602 = vsel %vm1601, %v1598, %v1573
        %vm1603 = vcmp.lt.s32.totalorder %v1600, %v1575
        %v1604 = vsel %vm1603, %v1600, %v1575
        %vm1605 = vcmp.lt.s32.totalorder %v1602, %v1577
        %v1606 = vsel %vm1605, %v1602, %v1577
        %vm1607 = vcmp.lt.s32.totalorder %v1604, %v1579
        %v1608 = vsel %vm1607, %v1604, %v1579
        %vm1609 = vcmp.lt.s32.totalorder %v1606, %v1581
        %v1610 = vsel %vm1609, %v1606, %v1581
        %vm1611 = vcmp.lt.s32.totalorder %v1608, %v1583
        %v1612 = vsel %vm1611, %v1608, %v1583
        %vm1613 = vcmp.lt.s32.totalorder %v1610, %v1585
        %v1614 = vsel %vm1613, %v1610, %v1585
        %vm1615 = vcmp.lt.s32.totalorder %v1612, %v1587
        %v1616 = vsel %vm1615, %v1612, %v1587
        %vm1617 = vcmp.lt.s32.totalorder %v1614, %v1589
        %v1618 = vsel %vm1617, %v1614, %v1589
        %vm1619 = vcmp.lt.s32.totalorder %v1616, %v1591
        %v1620 = vsel %vm1619, %v1616, %v1591
        %vm1621 = vcmp.lt.s32.totalorder %v1618, %v1620
        %v1622 = vsel %vm1621, %v1618, %v1620
        %v1623 = vrot.slane %v1622, 4
        %vm1624 = vcmp.lt.s32.totalorder %v1622, %v1623
        %v1625 = vsel %vm1624, %v1622, %v1623
        %v1626 = vrot.slane %v1625, 2
        %vm1627 = vcmp.lt.s32.totalorder %v1625, %v1626
        %v1628 = vsel %vm1627, %v1625, %v1626
        %v1629 = vrot.slane %v1628, 1
        %vm1630 = vcmp.lt.s32.totalorder %v1628, %v1629
        %v1631 = vsel %vm1630, %v1628, %v1629
        %vm1632 = vcmp.lt.s32.totalorder %v1562, %v1566
        %v1633 = vsel %vm1632, %v1562, %v1566
        %vm1634 = vcmp.lt.s32.totalorder %v1564, %v1568
        %v1635 = vsel %vm1634, %v1564, %v1568
        %vm1636 = vcmp.lt.s32.totalorder %v1633, %v1570
        %v1637 = vsel %vm1636, %v1633, %v1570
        %vm1638 = vcmp.lt.s32.totalorder %v1635, %v1572
        %v1639 = vsel %vm1638, %v1635, %v1572
        %vm1640 = vcmp.lt.s32.totalorder %v1637, %v1574
        %v1641 = vsel %vm1640, %v1637, %v1574
        %vm1642 = vcmp.lt.s32.totalorder %v1639, %v1576
        %v1643 = vsel %vm1642, %v1639, %v1576
        %vm1644 = vcmp.lt.s32.totalorder %v1641, %v1578
        %v1645 = vsel %vm1644, %v1641, %v1578
        %vm1646 = vcmp.lt.s32.totalorder %v1643, %v1580
        %v1647 = vsel %vm1646, %v1643, %v1580
        %vm1648 = vcmp.lt.s32.totalorder %v1645, %v1582
        %v1649 = vsel %vm1648, %v1645, %v1582
        %vm1650 = vcmp.lt.s32.totalorder %v1647, %v1584
        %v1651 = vsel %vm1650, %v1647, %v1584
        %vm1652 = vcmp.lt.s32.totalorder %v1649, %v1586
        %v1653 = vsel %vm1652, %v1649, %v1586
        %vm1654 = vcmp.lt.s32.totalorder %v1651, %v1588
        %v1655 = vsel %vm1654, %v1651, %v1588
        %vm1656 = vcmp.lt.s32.totalorder %v1653, %v1590
        %v1657 = vsel %vm1656, %v1653, %v1590
        %vm1658 = vcmp.lt.s32.totalorder %v1655, %v1592
        %v1659 = vsel %vm1658, %v1655, %v1592
        %vm1660 = vcmp.lt.s32.totalorder %v1657, %v1659
        %v1661 = vsel %vm1660, %v1657, %v1659
        %v1662 = vrot.slane %v1661, 4
        %vm1663 = vcmp.lt.s32.totalorder %v1661, %v1662
        %v1664 = vsel %vm1663, %v1661, %v1662
        %v1665 = vrot.slane %v1664, 2
        %vm1666 = vcmp.lt.s32.totalorder %v1664, %v1665
        %v1667 = vsel %vm1666, %v1664, %v1665
        %v1668 = vrot.slane %v1667, 1
        %vm1669 = vcmp.lt.s32.totalorder %v1667, %v1668
        %v1670 = vsel %vm1669, %v1667, %v1668
        %vm1671 = vcmp.eq.s32.totalorder %v727, %v1631
        %vm1672 = vcmp.eq.s32.totalorder %v727, %v1670
        %vm1673 = vcmp.eq.s32.totalorder %v728, %v1631
        %vm1674 = vcmp.eq.s32.totalorder %v728, %v1670
        %vm1675 = vcmp.eq.s32.totalorder %v729, %v1631
        %vm1676 = vcmp.eq.s32.totalorder %v729, %v1670
        %vm1677 = vcmp.eq.s32.totalorder %v730, %v1631
        %vm1678 = vcmp.eq.s32.totalorder %v730, %v1670
        %vm1679 = vcmp.eq.s32.totalorder %v731, %v1631
        %vm1680 = vcmp.eq.s32.totalorder %v731, %v1670
        %vm1681 = vcmp.eq.s32.totalorder %v732, %v1631
        %vm1682 = vcmp.eq.s32.totalorder %v732, %v1670
        %vm1683 = vcmp.eq.s32.totalorder %v733, %v1631
        %vm1684 = vcmp.eq.s32.totalorder %v733, %v1670
        %vm1685 = vcmp.eq.s32.totalorder %v734, %v1631
        %vm1686 = vcmp.eq.s32.totalorder %v734, %v1670
        %vm1687 = vcmp.eq.s32.totalorder %v735, %v1631
        %vm1688 = vcmp.eq.s32.totalorder %v735, %v1670
        %vm1689 = vcmp.eq.s32.totalorder %v736, %v1631
        %vm1690 = vcmp.eq.s32.totalorder %v736, %v1670
        %vm1691 = vcmp.eq.s32.totalorder %v737, %v1631
        %vm1692 = vcmp.eq.s32.totalorder %v737, %v1670
        %vm1693 = vcmp.eq.s32.totalorder %v738, %v1631
        %vm1694 = vcmp.eq.s32.totalorder %v738, %v1670
        %vm1695 = vcmp.eq.s32.totalorder %v739, %v1631
        %vm1696 = vcmp.eq.s32.totalorder %v739, %v1670
        %vm1697 = vcmp.eq.s32.totalorder %v740, %v1631
        %vm1698 = vcmp.eq.s32.totalorder %v740, %v1670
        %vm1699 = vcmp.eq.s32.totalorder %v741, %v1631
        %vm1700 = vcmp.eq.s32.totalorder %v741, %v1670
        %vm1701 = vcmp.eq.s32.totalorder %v742, %v1631
        %vm1702 = vcmp.eq.s32.totalorder %v742, %v1670
        %v1703 = vsel %vm1671, inf, %v1455
        %v1704 = vsel %vm1672, inf, %v1456
        %v1705 = vsel %vm1673, inf, %v1457
        %v1706 = vsel %vm1674, inf, %v1458
        %v1707 = vsel %vm1675, inf, %v1459
        %v1708 = vsel %vm1676, inf, %v1460
        %v1709 = vsel %vm1677, inf, %v1461
        %v1710 = vsel %vm1678, inf, %v1462
        %v1711 = vsel %vm1679, inf, %v1463
        %v1712 = vsel %vm1680, inf, %v1464
        %v1713 = vsel %vm1681, inf, %v1465
        %v1714 = vsel %vm1682, inf, %v1466
        %v1715 = vsel %vm1683, inf, %v1467
        %v1716 = vsel %vm1684, inf, %v1468
        %v1717 = vsel %vm1685, inf, %v1469
        %v1718 = vsel %vm1686, inf, %v1470
        %v1719 = vsel %vm1687, inf, %v1471
        %v1720 = vsel %vm1688, inf, %v1472
        %v1721 = vsel %vm1689, inf, %v1473
        %v1722 = vsel %vm1690, inf, %v1474
        %v1723 = vsel %vm1691, inf, %v1475
        %v1724 = vsel %vm1692, inf, %v1476
        %v1725 = vsel %vm1693, inf, %v1477
        %v1726 = vsel %vm1694, inf, %v1478
        %v1727 = vsel %vm1695, inf, %v1479
        %v1728 = vsel %vm1696, inf, %v1480
        %v1729 = vsel %vm1697, inf, %v1481
        %v1730 = vsel %vm1698, inf, %v1482
        %v1731 = vsel %vm1699, inf, %v1483
        %v1732 = vsel %vm1700, inf, %v1484
        %v1733 = vsel %vm1701, inf, %v1485
        %v1734 = vsel %vm1702, inf, %v1486
        %v1735 = vmin.f32 %v1703, %v1707
        %v1736 = vmin.f32 %v1705, %v1709
        %v1737 = vmin.f32 %v1735, %v1711
        %v1738 = vmin.f32 %v1736, %v1713
        %v1739 = vmin.f32 %v1737, %v1715
        %v1740 = vmin.f32 %v1738, %v1717
        %v1741 = vmin.f32 %v1739, %v1719
        %v1742 = vmin.f32 %v1740, %v1721
        %v1743 = vmin.f32 %v1741, %v1723
        %v1744 = vmin.f32 %v1742, %v1725
        %v1745 = vmin.f32 %v1743, %v1727
        %v1746 = vmin.f32 %v1744, %v1729
        %v1747 = vmin.f32 %v1745, %v1731
        %v1748 = vmin.f32 %v1746, %v1733
        %v1749 = vmin.f32 %v1747, %v1748
        %v1750 = vrot.slane %v1749, 4
        %v1751 = vmin.f32 %v1749, %v1750
        %v1752 = vrot.slane %v1751, 2
        %v1753 = vmin.f32 %v1751, %v1752
        %v1754 = vrot.slane %v1753, 1
        %v1755 = vmin.f32 %v1753, %v1754
        %v1756 = vmin.f32 %v1704, %v1708
        %v1757 = vmin.f32 %v1706, %v1710
        %v1758 = vmin.f32 %v1756, %v1712
        %v1759 = vmin.f32 %v1757, %v1714
        %v1760 = vmin.f32 %v1758, %v1716
        %v1761 = vmin.f32 %v1759, %v1718
        %v1762 = vmin.f32 %v1760, %v1720
        %v1763 = vmin.f32 %v1761, %v1722
        %v1764 = vmin.f32 %v1762, %v1724
        %v1765 = vmin.f32 %v1763, %v1726
        %v1766 = vmin.f32 %v1764, %v1728
        %v1767 = vmin.f32 %v1765, %v1730
        %v1768 = vmin.f32 %v1766, %v1732
        %v1769 = vmin.f32 %v1767, %v1734
        %v1770 = vmin.f32 %v1768, %v1769
        %v1771 = vrot.slane %v1770, 4
        %v1772 = vmin.f32 %v1770, %v1771
        %v1773 = vrot.slane %v1772, 2
        %v1774 = vmin.f32 %v1772, %v1773
        %v1775 = vrot.slane %v1774, 1
        %v1776 = vmin.f32 %v1774, %v1775
        %vm1777 = vcmp.eq.f32.partialorder %v1703, %v1755
        %vm1778 = vcmp.eq.f32.partialorder %v1704, %v1776
        %vm1779 = vcmp.eq.f32.partialorder %v1705, %v1755
        %vm1780 = vcmp.eq.f32.partialorder %v1706, %v1776
        %vm1781 = vcmp.eq.f32.partialorder %v1707, %v1755
        %vm1782 = vcmp.eq.f32.partialorder %v1708, %v1776
        %vm1783 = vcmp.eq.f32.partialorder %v1709, %v1755
        %vm1784 = vcmp.eq.f32.partialorder %v1710, %v1776
        %vm1785 = vcmp.eq.f32.partialorder %v1711, %v1755
        %vm1786 = vcmp.eq.f32.partialorder %v1712, %v1776
        %vm1787 = vcmp.eq.f32.partialorder %v1713, %v1755
        %vm1788 = vcmp.eq.f32.partialorder %v1714, %v1776
        %vm1789 = vcmp.eq.f32.partialorder %v1715, %v1755
        %vm1790 = vcmp.eq.f32.partialorder %v1716, %v1776
        %vm1791 = vcmp.eq.f32.partialorder %v1717, %v1755
        %vm1792 = vcmp.eq.f32.partialorder %v1718, %v1776
        %vm1793 = vcmp.eq.f32.partialorder %v1719, %v1755
        %vm1794 = vcmp.eq.f32.partialorder %v1720, %v1776
        %vm1795 = vcmp.eq.f32.partialorder %v1721, %v1755
        %vm1796 = vcmp.eq.f32.partialorder %v1722, %v1776
        %vm1797 = vcmp.eq.f32.partialorder %v1723, %v1755
        %vm1798 = vcmp.eq.f32.partialorder %v1724, %v1776
        %vm1799 = vcmp.eq.f32.partialorder %v1725, %v1755
        %vm1800 = vcmp.eq.f32.partialorder %v1726, %v1776
        %vm1801 = vcmp.eq.f32.partialorder %v1727, %v1755
        %vm1802 = vcmp.eq.f32.partialorder %v1728, %v1776
        %vm1803 = vcmp.eq.f32.partialorder %v1729, %v1755
        %vm1804 = vcmp.eq.f32.partialorder %v1730, %v1776
        %vm1805 = vcmp.eq.f32.partialorder %v1731, %v1755
        %vm1806 = vcmp.eq.f32.partialorder %v1732, %v1776
        %vm1807 = vcmp.eq.f32.partialorder %v1733, %v1755
        %vm1808 = vcmp.eq.f32.partialorder %v1734, %v1776
        %v1809 = vsel %vm1777, %v727, 128
        %v1810 = vsel %vm1778, %v727, 128
        %v1811 = vsel %vm1779, %v728, 128
        %v1812 = vsel %vm1780, %v728, 128
        %v1813 = vsel %vm1781, %v729, 128
        %v1814 = vsel %vm1782, %v729, 128
        %v1815 = vsel %vm1783, %v730, 128
        %v1816 = vsel %vm1784, %v730, 128
        %v1817 = vsel %vm1785, %v731, 128
        %v1818 = vsel %vm1786, %v731, 128
        %v1819 = vsel %vm1787, %v732, 128
        %v1820 = vsel %vm1788, %v732, 128
        %v1821 = vsel %vm1789, %v733, 128
        %v1822 = vsel %vm1790, %v733, 128
        %v1823 = vsel %vm1791, %v734, 128
        %v1824 = vsel %vm1792, %v734, 128
        %v1825 = vsel %vm1793, %v735, 128
        %v1826 = vsel %vm1794, %v735, 128
        %v1827 = vsel %vm1795, %v736, 128
        %v1828 = vsel %vm1796, %v736, 128
        %v1829 = vsel %vm1797, %v737, 128
        %v1830 = vsel %vm1798, %v737, 128
        %v1831 = vsel %vm1799, %v738, 128
        %v1832 = vsel %vm1800, %v738, 128
        %v1833 = vsel %vm1801, %v739, 128
        %v1834 = vsel %vm1802, %v739, 128
        %v1835 = vsel %vm1803, %v740, 128
        %v1836 = vsel %vm1804, %v740, 128
        %v1837 = vsel %vm1805, %v741, 128
        %v1838 = vsel %vm1806, %v741, 128
        %v1839 = vsel %vm1807, %v742, 128
        %v1840 = vsel %vm1808, %v742, 128
        %vm1841 = vcmp.lt.s32.totalorder %v1809, %v1813
        %v1842 = vsel %vm1841, %v1809, %v1813
        %vm1843 = vcmp.lt.s32.totalorder %v1811, %v1815
        %v1844 = vsel %vm1843, %v1811, %v1815
        %vm1845 = vcmp.lt.s32.totalorder %v1842, %v1817
        %v1846 = vsel %vm1845, %v1842, %v1817
        %vm1847 = vcmp.lt.s32.totalorder %v1844, %v1819
        %v1848 = vsel %vm1847, %v1844, %v1819
        %vm1849 = vcmp.lt.s32.totalorder %v1846, %v1821
        %v1850 = vsel %vm1849, %v1846, %v1821
        %vm1851 = vcmp.lt.s32.totalorder %v1848, %v1823
        %v1852 = vsel %vm1851, %v1848, %v1823
        %vm1853 = vcmp.lt.s32.totalorder %v1850, %v1825
        %v1854 = vsel %vm1853, %v1850, %v1825
        %vm1855 = vcmp.lt.s32.totalorder %v1852, %v1827
        %v1856 = vsel %vm1855, %v1852, %v1827
        %vm1857 = vcmp.lt.s32.totalorder %v1854, %v1829
        %v1858 = vsel %vm1857, %v1854, %v1829
        %vm1859 = vcmp.lt.s32.totalorder %v1856, %v1831
        %v1860 = vsel %vm1859, %v1856, %v1831
        %vm1861 = vcmp.lt.s32.totalorder %v1858, %v1833
        %v1862 = vsel %vm1861, %v1858, %v1833
        %vm1863 = vcmp.lt.s32.totalorder %v1860, %v1835
        %v1864 = vsel %vm1863, %v1860, %v1835
        %vm1865 = vcmp.lt.s32.totalorder %v1862, %v1837
        %v1866 = vsel %vm1865, %v1862, %v1837
        %vm1867 = vcmp.lt.s32.totalorder %v1864, %v1839
        %v1868 = vsel %vm1867, %v1864, %v1839
        %vm1869 = vcmp.lt.s32.totalorder %v1866, %v1868
        %v1870 = vsel %vm1869, %v1866, %v1868
        %v1871 = vrot.slane %v1870, 4
        %vm1872 = vcmp.lt.s32.totalorder %v1870, %v1871
        %v1873 = vsel %vm1872, %v1870, %v1871
        %v1874 = vrot.slane %v1873, 2
        %vm1875 = vcmp.lt.s32.totalorder %v1873, %v1874
        %v1876 = vsel %vm1875, %v1873, %v1874
        %v1877 = vrot.slane %v1876, 1
        %vm1878 = vcmp.lt.s32.totalorder %v1876, %v1877
        %v1879 = vsel %vm1878, %v1876, %v1877
        %vm1880 = vcmp.lt.s32.totalorder %v1810, %v1814
        %v1881 = vsel %vm1880, %v1810, %v1814
        %vm1882 = vcmp.lt.s32.totalorder %v1812, %v1816
        %v1883 = vsel %vm1882, %v1812, %v1816
        %vm1884 = vcmp.lt.s32.totalorder %v1881, %v1818
        %v1885 = vsel %vm1884, %v1881, %v1818
        %vm1886 = vcmp.lt.s32.totalorder %v1883, %v1820
        %v1887 = vsel %vm1886, %v1883, %v1820
        %vm1888 = vcmp.lt.s32.totalorder %v1885, %v1822
        %v1889 = vsel %vm1888, %v1885, %v1822
        %vm1890 = vcmp.lt.s32.totalorder %v1887, %v1824
        %v1891 = vsel %vm1890, %v1887, %v1824
        %vm1892 = vcmp.lt.s32.totalorder %v1889, %v1826
        %v1893 = vsel %vm1892, %v1889, %v1826
        %vm1894 = vcmp.lt.s32.totalorder %v1891, %v1828
        %v1895 = vsel %vm1894, %v1891, %v1828
        %vm1896 = vcmp.lt.s32.totalorder %v1893, %v1830
        %v1897 = vsel %vm1896, %v1893, %v1830
        %vm1898 = vcmp.lt.s32.totalorder %v1895, %v1832
        %v1899 = vsel %vm1898, %v1895, %v1832
        %vm1900 = vcmp.lt.s32.totalorder %v1897, %v1834
        %v1901 = vsel %vm1900, %v1897, %v1834
        %vm1902 = vcmp.lt.s32.totalorder %v1899, %v1836
        %v1903 = vsel %vm1902, %v1899, %v1836
        %vm1904 = vcmp.lt.s32.totalorder %v1901, %v1838
        %v1905 = vsel %vm1904, %v1901, %v1838
        %vm1906 = vcmp.lt.s32.totalorder %v1903, %v1840
        %v1907 = vsel %vm1906, %v1903, %v1840
        %vm1908 = vcmp.lt.s32.totalorder %v1905, %v1907
        %v1909 = vsel %vm1908, %v1905, %v1907
        %v1910 = vrot.slane %v1909, 4
        %vm1911 = vcmp.lt.s32.totalorder %v1909, %v1910
        %v1912 = vsel %vm1911, %v1909, %v1910
        %v1913 = vrot.slane %v1912, 2
        %vm1914 = vcmp.lt.s32.totalorder %v1912, %v1913
        %v1915 = vsel %vm1914, %v1912, %v1913
        %v1916 = vrot.slane %v1915, 1
        %vm1917 = vcmp.lt.s32.totalorder %v1915, %v1916
        %v1918 = vsel %vm1917, %v1915, %v1916
        %v1919 = vsub.f32 %v763, %v1011
        %v1920 = vsub.f32 %v784, %v1032
        %v1921 = vmul.f32 %v1919, 1.442695
        %v1922 = vpow.pop %v1921
        %v1923 = vmul.f32 %v1920, 1.442695
        %v1924 = vpow.pop %v1923
        %v1925 = vsub.f32 %v763, %v1259
        %v1926 = vsub.f32 %v784, %v1280
        %v1927 = vmul.f32 %v1925, 1.442695
        %v1928 = vpow.pop %v1927
        %v1929 = vmul.f32 %v1926, 1.442695
        %v1930 = vpow.pop %v1929
        %v1931 = vsub.f32 %v763, %v1507
        %v1932 = vsub.f32 %v784, %v1528
        %v1933 = vmul.f32 %v1931, 1.442695
        %v1934 = vpow.pop %v1933
        %v1935 = vmul.f32 %v1932, 1.442695
        %v1936 = vpow.pop %v1935
        %v1937 = vsub.f32 %v763, %v1755
        %v1938 = vsub.f32 %v784, %v1776
        %v1939 = vmul.f32 %v1937, 1.442695
        %v1940 = vpow.pop %v1939
        %v1941 = vmul.f32 %v1938, 1.442695
        %v1942 = vpow.pop %v1941
        %v1943 = vadd.f32 %v1922, 1.0
        %v1944 = vadd.f32 %v1924, 1.0
        %v1945 = vadd.f32 %v1943, %v1928
        %v1946 = vadd.f32 %v1944, %v1930
        %v1947 = vadd.f32 %v1945, %v1934
        %v1948 = vadd.f32 %v1946, %v1936
        %v1949 = vadd.f32 %v1947, %v1940
        %v1950 = vadd.f32 %v1948, %v1942
        %v1951 = vrcp.pop %v1949
        %v1952 = vmul.f32 1.0, %v1951
        %v1953 = vrcp.pop %v1950
        %v1954 = vmul.f32 1.0, %v1953
        %v1955 = vsel %vm927, %v1952, 0.0
        %v1956 = vsel %vm928, %v1954, 0.0
        %v1957 = vsel %vm929, %v1952, 0.0
        %v1958 = vsel %vm930, %v1954, 0.0
        %v1959 = vsel %vm931, %v1952, 0.0
        %v1960 = vsel %vm932, %v1954, 0.0
        %v1961 = vsel %vm933, %v1952, 0.0
        %v1962 = vsel %vm934, %v1954, 0.0
        %v1963 = vsel %vm935, %v1952, 0.0
        %v1964 = vsel %vm936, %v1954, 0.0
        %v1965 = vsel %vm937, %v1952, 0.0
        %v1966 = vsel %vm938, %v1954, 0.0
        %v1967 = vsel %vm939, %v1952, 0.0
        %v1968 = vsel %vm940, %v1954, 0.0
        %v1969 = vsel %vm941, %v1952, 0.0
        %v1970 = vsel %vm942, %v1954, 0.0
        %v1971 = vsel %vm943, %v1952, 0.0
        %v1972 = vsel %vm944, %v1954, 0.0
        %v1973 = vsel %vm945, %v1952, 0.0
        %v1974 = vsel %vm946, %v1954, 0.0
        %v1975 = vsel %vm947, %v1952, 0.0
        %v1976 = vsel %vm948, %v1954, 0.0
        %v1977 = vsel %vm949, %v1952, 0.0
        %v1978 = vsel %vm950, %v1954, 0.0
        %v1979 = vsel %vm951, %v1952, 0.0
        %v1980 = vsel %vm952, %v1954, 0.0
        %v1981 = vsel %vm953, %v1952, 0.0
        %v1982 = vsel %vm954, %v1954, 0.0
        %v1983 = vsel %vm955, %v1952, 0.0
        %v1984 = vsel %vm956, %v1954, 0.0
        %v1985 = vsel %vm957, %v1952, 0.0
        %v1986 = vsel %vm958, %v1954, 0.0
        %v1987 = vadd.f32 %v1955, 0.0
        %v1988 = vadd.f32 %v1956, 0.0
        %v1989 = vadd.f32 %v1957, 0.0
        %v1990 = vadd.f32 %v1958, 0.0
        %v1991 = vadd.f32 %v1959, 0.0
        %v1992 = vadd.f32 %v1960, 0.0
        %v1993 = vadd.f32 %v1961, 0.0
        %v1994 = vadd.f32 %v1962, 0.0
        %v1995 = vadd.f32 %v1963, 0.0
        %v1996 = vadd.f32 %v1964, 0.0
        %v1997 = vadd.f32 %v1965, 0.0
        %v1998 = vadd.f32 %v1966, 0.0
        %v1999 = vadd.f32 %v1967, 0.0
        %v2000 = vadd.f32 %v1968, 0.0
        %v2001 = vadd.f32 %v1969, 0.0
        %v2002 = vadd.f32 %v1970, 0.0
        %v2003 = vadd.f32 %v1971, 0.0
        %v2004 = vadd.f32 %v1972, 0.0
        %v2005 = vadd.f32 %v1973, 0.0
        %v2006 = vadd.f32 %v1974, 0.0
        %v2007 = vadd.f32 %v1975, 0.0
        %v2008 = vadd.f32 %v1976, 0.0
        %v2009 = vadd.f32 %v1977, 0.0
        %v2010 = vadd.f32 %v1978, 0.0
        %v2011 = vadd.f32 %v1979, 0.0
        %v2012 = vadd.f32 %v1980, 0.0
        %v2013 = vadd.f32 %v1981, 0.0
        %v2014 = vadd.f32 %v1982, 0.0
        %v2015 = vadd.f32 %v1983, 0.0
        %v2016 = vadd.f32 %v1984, 0.0
        %v2017 = vadd.f32 %v1985, 0.0
        %v2018 = vadd.f32 %v1986, 0.0
        %v2019 = vmul.f32 %v1922, %v1952
        %v2020 = vmul.f32 %v1924, %v1954
        %v2021 = vsel %vm1175, %v2019, 0.0
        %v2022 = vsel %vm1176, %v2020, 0.0
        %v2023 = vsel %vm1177, %v2019, 0.0
        %v2024 = vsel %vm1178, %v2020, 0.0
        %v2025 = vsel %vm1179, %v2019, 0.0
        %v2026 = vsel %vm1180, %v2020, 0.0
        %v2027 = vsel %vm1181, %v2019, 0.0
        %v2028 = vsel %vm1182, %v2020, 0.0
        %v2029 = vsel %vm1183, %v2019, 0.0
        %v2030 = vsel %vm1184, %v2020, 0.0
        %v2031 = vsel %vm1185, %v2019, 0.0
        %v2032 = vsel %vm1186, %v2020, 0.0
        %v2033 = vsel %vm1187, %v2019, 0.0
        %v2034 = vsel %vm1188, %v2020, 0.0
        %v2035 = vsel %vm1189, %v2019, 0.0
        %v2036 = vsel %vm1190, %v2020, 0.0
        %v2037 = vsel %vm1191, %v2019, 0.0
        %v2038 = vsel %vm1192, %v2020, 0.0
        %v2039 = vsel %vm1193, %v2019, 0.0
        %v2040 = vsel %vm1194, %v2020, 0.0
        %v2041 = vsel %vm1195, %v2019, 0.0
        %v2042 = vsel %vm1196, %v2020, 0.0
        %v2043 = vsel %vm1197, %v2019, 0.0
        %v2044 = vsel %vm1198, %v2020, 0.0
        %v2045 = vsel %vm1199, %v2019, 0.0
        %v2046 = vsel %vm1200, %v2020, 0.0
        %v2047 = vsel %vm1201, %v2019, 0.0
        %v2048 = vsel %vm1202, %v2020, 0.0
        %v2049 = vsel %vm1203, %v2019, 0.0
        %v2050 = vsel %vm1204, %v2020, 0.0
        %v2051 = vsel %vm1205, %v2019, 0.0
        %v2052 = vsel %vm1206, %v2020, 0.0
        %v2053 = vadd.f32 %v1987, %v2021
        %v2054 = vadd.f32 %v1988, %v2022
        %v2055 = vadd.f32 %v1989, %v2023
        %v2056 = vadd.f32 %v1990, %v2024
        %v2057 = vadd.f32 %v1991, %v2025
        %v2058 = vadd.f32 %v1992, %v2026
        %v2059 = vadd.f32 %v1993, %v2027
        %v2060 = vadd.f32 %v1994, %v2028
        %v2061 = vadd.f32 %v1995, %v2029
        %v2062 = vadd.f32 %v1996, %v2030
        %v2063 = vadd.f32 %v1997, %v2031
        %v2064 = vadd.f32 %v1998, %v2032
        %v2065 = vadd.f32 %v1999, %v2033
        %v2066 = vadd.f32 %v2000, %v2034
        %v2067 = vadd.f32 %v2001, %v2035
        %v2068 = vadd.f32 %v2002, %v2036
        %v2069 = vadd.f32 %v2003, %v2037
        %v2070 = vadd.f32 %v2004, %v2038
        %v2071 = vadd.f32 %v2005, %v2039
        %v2072 = vadd.f32 %v2006, %v2040
        %v2073 = vadd.f32 %v2007, %v2041
        %v2074 = vadd.f32 %v2008, %v2042
        %v2075 = vadd.f32 %v2009, %v2043
        %v2076 = vadd.f32 %v2010, %v2044
        %v2077 = vadd.f32 %v2011, %v2045
        %v2078 = vadd.f32 %v2012, %v2046
        %v2079 = vadd.f32 %v2013, %v2047
        %v2080 = vadd.f32 %v2014, %v2048
        %v2081 = vadd.f32 %v2015, %v2049
        %v2082 = vadd.f32 %v2016, %v2050
        %v2083 = vadd.f32 %v2017, %v2051
        %v2084 = vadd.f32 %v2018, %v2052
        %v2085 = vmul.f32 %v1928, %v1952
        %v2086 = vmul.f32 %v1930, %v1954
        %v2087 = vsel %vm1423, %v2085, 0.0
        %v2088 = vsel %vm1424, %v2086, 0.0
        %v2089 = vsel %vm1425, %v2085, 0.0
        %v2090 = vsel %vm1426, %v2086, 0.0
        %v2091 = vsel %vm1427, %v2085, 0.0
        %v2092 = vsel %vm1428, %v2086, 0.0
        %v2093 = vsel %vm1429, %v2085, 0.0
        %v2094 = vsel %vm1430, %v2086, 0.0
        %v2095 = vsel %vm1431, %v2085, 0.0
        %v2096 = vsel %vm1432, %v2086, 0.0
        %v2097 = vsel %vm1433, %v2085, 0.0
        %v2098 = vsel %vm1434, %v2086, 0.0
        %v2099 = vsel %vm1435, %v2085, 0.0
        %v2100 = vsel %vm1436, %v2086, 0.0
        %v2101 = vsel %vm1437, %v2085, 0.0
        %v2102 = vsel %vm1438, %v2086, 0.0
        %v2103 = vsel %vm1439, %v2085, 0.0
        %v2104 = vsel %vm1440, %v2086, 0.0
        %v2105 = vsel %vm1441, %v2085, 0.0
        %v2106 = vsel %vm1442, %v2086, 0.0
        %v2107 = vsel %vm1443, %v2085, 0.0
        %v2108 = vsel %vm1444, %v2086, 0.0
        %v2109 = vsel %vm1445, %v2085, 0.0
        %v2110 = vsel %vm1446, %v2086, 0.0
        %v2111 = vsel %vm1447, %v2085, 0.0
        %v2112 = vsel %vm1448, %v2086, 0.0
        %v2113 = vsel %vm1449, %v2085, 0.0
        %v2114 = vsel %vm1450, %v2086, 0.0
        %v2115 = vsel %vm1451, %v2085, 0.0
        %v2116 = vsel %vm1452, %v2086, 0.0
        %v2117 = vsel %vm1453, %v2085, 0.0
        %v2118 = vsel %vm1454, %v2086, 0.0
        %v2119 = vadd.f32 %v2053, %v2087
        %v2120 = vadd.f32 %v2054, %v2088
        %v2121 = vadd.f32 %v2055, %v2089
        %v2122 = vadd.f32 %v2056, %v2090
        %v2123 = vadd.f32 %v2057, %v2091
        %v2124 = vadd.f32 %v2058, %v2092
        %v2125 = vadd.f32 %v2059, %v2093
        %v2126 = vadd.f32 %v2060, %v2094
        %v2127 = vadd.f32 %v2061, %v2095
        %v2128 = vadd.f32 %v2062, %v2096
        %v2129 = vadd.f32 %v2063, %v2097
        %v2130 = vadd.f32 %v2064, %v2098
        %v2131 = vadd.f32 %v2065, %v2099
        %v2132 = vadd.f32 %v2066, %v2100
        %v2133 = vadd.f32 %v2067, %v2101
        %v2134 = vadd.f32 %v2068, %v2102
        %v2135 = vadd.f32 %v2069, %v2103
        %v2136 = vadd.f32 %v2070, %v2104
        %v2137 = vadd.f32 %v2071, %v2105
        %v2138 = vadd.f32 %v2072, %v2106
        %v2139 = vadd.f32 %v2073, %v2107
        %v2140 = vadd.f32 %v2074, %v2108
        %v2141 = vadd.f32 %v2075, %v2109
        %v2142 = vadd.f32 %v2076, %v2110
        %v2143 = vadd.f32 %v2077, %v2111
        %v2144 = vadd.f32 %v2078, %v2112
        %v2145 = vadd.f32 %v2079, %v2113
        %v2146 = vadd.f32 %v2080, %v2114
        %v2147 = vadd.f32 %v2081, %v2115
        %v2148 = vadd.f32 %v2082, %v2116
        %v2149 = vadd.f32 %v2083, %v2117
        %v2150 = vadd.f32 %v2084, %v2118
        %v2151 = vmul.f32 %v1934, %v1952
        %v2152 = vmul.f32 %v1936, %v1954
        %v2153 = vsel %vm1671, %v2151, 0.0
        %v2154 = vsel %vm1672, %v2152, 0.0
        %v2155 = vsel %vm1673, %v2151, 0.0
        %v2156 = vsel %vm1674, %v2152, 0.0
        %v2157 = vsel %vm1675, %v2151, 0.0
        %v2158 = vsel %vm1676, %v2152, 0.0
        %v2159 = vsel %vm1677, %v2151, 0.0
        %v2160 = vsel %vm1678, %v2152, 0.0
        %v2161 = vsel %vm1679, %v2151, 0.0
        %v2162 = vsel %vm1680, %v2152, 0.0
        %v2163 = vsel %vm1681, %v2151, 0.0
        %v2164 = vsel %vm1682, %v2152, 0.0
        %v2165 = vsel %vm1683, %v2151, 0.0
        %v2166 = vsel %vm1684, %v2152, 0.0
        %v2167 = vsel %vm1685, %v2151, 0.0
        %v2168 = vsel %vm1686, %v2152, 0.0
        %v2169 = vsel %vm1687, %v2151, 0.0
        %v2170 = vsel %vm1688, %v2152, 0.0
        %v2171 = vsel %vm1689, %v2151, 0.0
        %v2172 = vsel %vm1690, %v2152, 0.0
        %v2173 = vsel %vm1691, %v2151, 0.0
        %v2174 = vsel %vm1692, %v2152, 0.0
        %v2175 = vsel %vm1693, %v2151, 0.0
        %v2176 = vsel %vm1694, %v2152, 0.0
        %v2177 = vsel %vm1695, %v2151, 0.0
        %v2178 = vsel %vm1696, %v2152, 0.0
        %v2179 = vsel %vm1697, %v2151, 0.0
        %v2180 = vsel %vm1698, %v2152, 0.0
        %v2181 = vsel %vm1699, %v2151, 0.0
        %v2182 = vsel %vm1700, %v2152, 0.0
        %v2183 = vsel %vm1701, %v2151, 0.0
        %v2184 = vsel %vm1702, %v2152, 0.0
        %v2185 = vadd.f32 %v2119, %v2153
        %v2186 = vadd.f32 %v2120, %v2154
        %v2187 = vadd.f32 %v2121, %v2155
        %v2188 = vadd.f32 %v2122, %v2156
        %v2189 = vadd.f32 %v2123, %v2157
        %v2190 = vadd.f32 %v2124, %v2158
        %v2191 = vadd.f32 %v2125, %v2159
        %v2192 = vadd.f32 %v2126, %v2160
        %v2193 = vadd.f32 %v2127, %v2161
        %v2194 = vadd.f32 %v2128, %v2162
        %v2195 = vadd.f32 %v2129, %v2163
        %v2196 = vadd.f32 %v2130, %v2164
        %v2197 = vadd.f32 %v2131, %v2165
        %v2198 = vadd.f32 %v2132, %v2166
        %v2199 = vadd.f32 %v2133, %v2167
        %v2200 = vadd.f32 %v2134, %v2168
        %v2201 = vadd.f32 %v2135, %v2169
        %v2202 = vadd.f32 %v2136, %v2170
        %v2203 = vadd.f32 %v2137, %v2171
        %v2204 = vadd.f32 %v2138, %v2172
        %v2205 = vadd.f32 %v2139, %v2173
        %v2206 = vadd.f32 %v2140, %v2174
        %v2207 = vadd.f32 %v2141, %v2175
        %v2208 = vadd.f32 %v2142, %v2176
        %v2209 = vadd.f32 %v2143, %v2177
        %v2210 = vadd.f32 %v2144, %v2178
        %v2211 = vadd.f32 %v2145, %v2179
        %v2212 = vadd.f32 %v2146, %v2180
        %v2213 = vadd.f32 %v2147, %v2181
        %v2214 = vadd.f32 %v2148, %v2182
        %v2215 = vadd.f32 %v2149, %v2183
        %v2216 = vadd.f32 %v2150, %v2184
        %v2217 = vmul.f32 %v1940, %v1952
        %v2218 = vmul.f32 %v1942, %v1954
        %vm2219 = vcmp.eq.s32.totalorder %v727, %v1879
        %vm2220 = vcmp.eq.s32.totalorder %v727, %v1918
        %vm2221 = vcmp.eq.s32.totalorder %v728, %v1879
        %vm2222 = vcmp.eq.s32.totalorder %v728, %v1918
        %vm2223 = vcmp.eq.s32.totalorder %v729, %v1879
        %vm2224 = vcmp.eq.s32.totalorder %v729, %v1918
        %vm2225 = vcmp.eq.s32.totalorder %v730, %v1879
        %vm2226 = vcmp.eq.s32.totalorder %v730, %v1918
        %vm2227 = vcmp.eq.s32.totalorder %v731, %v1879
        %vm2228 = vcmp.eq.s32.totalorder %v731, %v1918
        %vm2229 = vcmp.eq.s32.totalorder %v732, %v1879
        %vm2230 = vcmp.eq.s32.totalorder %v732, %v1918
        %vm2231 = vcmp.eq.s32.totalorder %v733, %v1879
        %vm2232 = vcmp.eq.s32.totalorder %v733, %v1918
        %vm2233 = vcmp.eq.s32.totalorder %v734, %v1879
        %vm2234 = vcmp.eq.s32.totalorder %v734, %v1918
        %vm2235 = vcmp.eq.s32.totalorder %v735, %v1879
        %vm2236 = vcmp.eq.s32.totalorder %v735, %v1918
        %vm2237 = vcmp.eq.s32.totalorder %v736, %v1879
        %vm2238 = vcmp.eq.s32.totalorder %v736, %v1918
        %vm2239 = vcmp.eq.s32.totalorder %v737, %v1879
        %vm2240 = vcmp.eq.s32.totalorder %v737, %v1918
        %vm2241 = vcmp.eq.s32.totalorder %v738, %v1879
        %vm2242 = vcmp.eq.s32.totalorder %v738, %v1918
        %vm2243 = vcmp.eq.s32.totalorder %v739, %v1879
        %vm2244 = vcmp.eq.s32.totalorder %v739, %v1918
        %vm2245 = vcmp.eq.s32.totalorder %v740, %v1879
        %vm2246 = vcmp.eq.s32.totalorder %v740, %v1918
        %vm2247 = vcmp.eq.s32.totalorder %v741, %v1879
        %vm2248 = vcmp.eq.s32.totalorder %v741, %v1918
        %vm2249 = vcmp.eq.s32.totalorder %v742, %v1879
        %vm2250 = vcmp.eq.s32.totalorder %v742, %v1918
        %v2251 = vsel %vm2219, %v2217, 0.0
        %v2252 = vsel %vm2220, %v2218, 0.0
        %v2253 = vsel %vm2221, %v2217, 0.0
        %v2254 = vsel %vm2222, %v2218, 0.0
        %v2255 = vsel %vm2223, %v2217, 0.0
        %v2256 = vsel %vm2224, %v2218, 0.0
        %v2257 = vsel %vm2225, %v2217, 0.0
        %v2258 = vsel %vm2226, %v2218, 0.0
        %v2259 = vsel %vm2227, %v2217, 0.0
        %v2260 = vsel %vm2228, %v2218, 0.0
        %v2261 = vsel %vm2229, %v2217, 0.0
        %v2262 = vsel %vm2230, %v2218, 0.0
        %v2263 = vsel %vm2231, %v2217, 0.0
        %v2264 = vsel %vm2232, %v2218, 0.0
        %v2265 = vsel %vm2233, %v2217, 0.0
        %v2266 = vsel %vm2234, %v2218, 0.0
        %v2267 = vsel %vm2235, %v2217, 0.0
        %v2268 = vsel %vm2236, %v2218, 0.0
        %v2269 = vsel %vm2237, %v2217, 0.0
        %v2270 = vsel %vm2238, %v2218, 0.0
        %v2271 = vsel %vm2239, %v2217, 0.0
        %v2272 = vsel %vm2240, %v2218, 0.0
        %v2273 = vsel %vm2241, %v2217, 0.0
        %v2274 = vsel %vm2242, %v2218, 0.0
        %v2275 = vsel %vm2243, %v2217, 0.0
        %v2276 = vsel %vm2244, %v2218, 0.0
        %v2277 = vsel %vm2245, %v2217, 0.0
        %v2278 = vsel %vm2246, %v2218, 0.0
        %v2279 = vsel %vm2247, %v2217, 0.0
        %v2280 = vsel %vm2248, %v2218, 0.0
        %v2281 = vsel %vm2249, %v2217, 0.0
        %v2282 = vsel %vm2250, %v2218, 0.0
        %v2283 = vadd.f32 %v2185, %v2251
        %v2284 = vadd.f32 %v2186, %v2252
        %v2285 = vadd.f32 %v2187, %v2253
        %v2286 = vadd.f32 %v2188, %v2254
        %v2287 = vadd.f32 %v2189, %v2255
        %v2288 = vadd.f32 %v2190, %v2256
        %v2289 = vadd.f32 %v2191, %v2257
        %v2290 = vadd.f32 %v2192, %v2258
        %v2291 = vadd.f32 %v2193, %v2259
        %v2292 = vadd.f32 %v2194, %v2260
        %v2293 = vadd.f32 %v2195, %v2261
        %v2294 = vadd.f32 %v2196, %v2262
        %v2295 = vadd.f32 %v2197, %v2263
        %v2296 = vadd.f32 %v2198, %v2264
        %v2297 = vadd.f32 %v2199, %v2265
        %v2298 = vadd.f32 %v2200, %v2266
        %v2299 = vadd.f32 %v2201, %v2267
        %v2300 = vadd.f32 %v2202, %v2268
        %v2301 = vadd.f32 %v2203, %v2269
        %v2302 = vadd.f32 %v2204, %v2270
        %v2303 = vadd.f32 %v2205, %v2271
        %v2304 = vadd.f32 %v2206, %v2272
        %v2305 = vadd.f32 %v2207, %v2273
        %v2306 = vadd.f32 %v2208, %v2274
        %v2307 = vadd.f32 %v2209, %v2275
        %v2308 = vadd.f32 %v2210, %v2276
        %v2309 = vadd.f32 %v2211, %v2277
        %v2310 = vadd.f32 %v2212, %v2278
        %v2311 = vadd.f32 %v2213, %v2279
        %v2312 = vadd.f32 %v2214, %v2280
        %v2313 = vadd.f32 %v2215, %v2281
        %v2314 = vadd.f32 %v2216, %v2282
        %2315 = vmatprep.subr.mxu0 %v2314
        %2316 = vmatpush1.msra.mxu0 %v2313
        %2317 = vmatprep.subr.mxu0 %v2312
        %2318 = vmatpush1.msra.mxu0 %v2311
        %2319 = vmatprep.subr.mxu0 %v2310
        %2320 = vmatpush1.msra.mxu0 %v2309
        %2321 = vmatprep.subr.mxu0 %v2308
        %2322 = vmatpush1.msra.mxu0 %v2307
        %2323 = vmatprep.subr.mxu0 %v2306
        %2324 = vmatpush1.msra.mxu0 %v2305
        %2325 = vmatprep.subr.mxu0 %v2304
        %2326 = vmatpush1.msra.mxu0 %v2303
        %2327 = vmatprep.subr.mxu0 %v2302
        %2328 = vmatpush1.msra.mxu0 %v2301
        %2329 = vmatprep.subr.mxu0 %v2300
        %2330 = vmatpush1.msra.mxu0 %v2299
        %2331 = vmatprep.subr.mxu0 %v2298
        %2332 = vmatpush1.msra.mxu0 %v2297
        %2333 = vmatprep.subr.mxu0 %v2296
        %2334 = vmatpush1.msra.mxu0 %v2295
        %2335 = vmatprep.subr.mxu0 %v2294
        %2336 = vmatpush1.msra.mxu0 %v2293
        %2337 = vmatprep.subr.mxu0 %v2292
        %2338 = vmatpush1.msra.mxu0 %v2291
        %2339 = vmatprep.subr.mxu0 %v2290
        %2340 = vmatpush1.msra.mxu0 %v2289
        %2341 = vmatprep.subr.mxu0 %v2288
        %2342 = vmatpush1.msra.mxu0 %v2287
        %2343 = vmatprep.subr.mxu0 %v2286
        %2344 = vmatpush1.msra.mxu0 %v2285
        %2345 = vmatprep.subr.mxu0 %v2284
        %2346 = vmatpush1.msra.mxu0 %v2283
        %2347 = vmatprep.subr.mxu0 0.0
        %2348 = vmatpush2.msra.mxu0 0.0
        %2349 = vmatprep.subr.mxu0 0.0
        %2350 = vmatpush2.msra.mxu0 0.0
        %2351 = vmatprep.subr.mxu0 0.0
        %2352 = vmatpush2.msra.mxu0 0.0
        %2353 = vmatprep.subr.mxu0 0.0
        %2354 = vmatpush2.msra.mxu0 0.0
        %2355 = vmatprep.subr.mxu0 0.0
        %2356 = vmatpush2.msra.mxu0 0.0
        %2357 = vmatprep.subr.mxu0 0.0
        %2358 = vmatpush2.msra.mxu0 0.0
        %2359 = vmatprep.subr.mxu0 0.0
        %2360 = vmatpush2.msra.mxu0 0.0
        %2361 = vmatprep.subr.mxu0 0.0
        %2362 = vmatpush2.msra.mxu0 0.0
        %2363 = vmatprep.subr.mxu0 0.0
        %2364 = vmatpush2.msra.mxu0 0.0
        %2365 = vmatprep.subr.mxu0 0.0
        %2366 = vmatpush2.msra.mxu0 0.0
        %2367 = vmatprep.subr.mxu0 0.0
        %2368 = vmatpush2.msra.mxu0 0.0
        %2369 = vmatprep.subr.mxu0 0.0
        %2370 = vmatpush2.msra.mxu0 0.0
        %2371 = vmatprep.subr.mxu0 0.0
        %2372 = vmatpush2.msra.mxu0 0.0
        %2373 = vmatprep.subr.mxu0 0.0
        %2374 = vmatpush2.msra.mxu0 0.0
        %2375 = vmatprep.subr.mxu0 0.0
        %2376 = vmatpush2.msra.mxu0 0.0
        %2377 = vmatprep.subr.mxu0 0.0
        %2378 = vmatpush2.msra.mxu0 0.0
        %2379 = vmatprep.mubr.f32.mxu0 0.0
        %2380 = vmatmul.mubr.f32.gmra.mxu0 %v294
        %v2381 = vpop.f32.mrf.mxu0
        %v2382 = vadd.f32 0.0, %v2381
        %v2383 = vpop.f32.mrf.mxu0
        %v2384 = vadd.f32 0.0, %v2383
        %2385 = vmatprep.mubr.f32.mxu0 0.0
        %2386 = vmatmul.mubr.f32.gmra.mxu0 %v295
        %v2387 = vpop.f32.mrf.mxu0
        %v2388 = vadd.f32 0.0, %v2387
        %v2389 = vpop.f32.mrf.mxu0
        %v2390 = vadd.f32 0.0, %v2389
        %2391 = vmatprep.mubr.f32.mxu0 0.0
        %2392 = vmatmul.mubr.f32.gmra.mxu0 %v296
        %v2393 = vpop.f32.mrf.mxu0
        %v2394 = vadd.f32 0.0, %v2393
        %v2395 = vpop.f32.mrf.mxu0
        %v2396 = vadd.f32 0.0, %v2395
        %2397 = vmatprep.mubr.f32.mxu0 0.0
        %2398 = vmatmul.mubr.f32.gmra.mxu0 %v297
        %v2399 = vpop.f32.mrf.mxu0
        %v2400 = vadd.f32 0.0, %v2399
        %v2401 = vpop.f32.mrf.mxu0
        %v2402 = vadd.f32 0.0, %v2401
        %2403 = vdwg.mxu0
        %2404 = vst [vmem:[%s260] sm:$0xff] %v2382
        %2405 = vst [vmem:[%s260 + $0x8] sm:$0xff] %v2384
        %2406 = vst [vmem:[%s260 + $0x10] sm:$0xff] %v2388
        %2407 = vst [vmem:[%s260 + $0x18] sm:$0xff] %v2390
        %2408 = vst [vmem:[%s260 + $0x20] sm:$0xff] %v2394
        %2409 = vst [vmem:[%s260 + $0x28] sm:$0xff] %v2396
        %2410 = vst [vmem:[%s260 + $0x30] sm:$0xff] %v2400
        %2411 = vst [vmem:[%s260 + $0x38] sm:$0xff] %v2402
        %v2412 = vcombine.low %v887, %v926
        %v2414 = vunpack.c.l.s4 1966171168
        %v2415 = vunpack.c.0.s8 %v2414
        %v2416 = vlaneseq
        %v2417 = vshrl.u32 %v2416, 7
        %v2418 = vsub.s32 %v2415, %v2417
        %v2419 = vrot.slane %v2412, %v2418
        %v2421 = vunpack.c.l.s4 1966171168
        %v2422 = vunpack.c.0.s8 %v2421
        %v2423 = vlaneseq
        %v2424 = vshrl.u32 %v2423, 7
        %v2425 = vsub.s32 %v2422, %v2424
        %v2426 = vrot.slane %v2419, %v2425
        %v2427 = vlaneseq
        %vm2428 = vcmp.ge.s32.totalorder %v2427, 0
        %vm2429 = vcmp.lt.s32.totalorder %v2427, 256
        %vm2430 = vmand %vm2428, %vm2429
        %2431 = vst.msk [vmem:[%s267] sm:$0x3] %vm2430, %v2426
        %s2432 = sand.u32 %s120, 1
        %s2433 = scalar_lea.sflag [#allocation4], %s2432
        %s2434 = sand.u32 %s120, 1
        %s2435 = smul.addr %s2434, 64
        %s2436 = scalar_lea.vmem [#allocation3], %s2435
        %s2437 = sand.u32 %s146, 1
        %s2438 = scalar_lea.sflag [#allocation6], %s2437
        %s2439 = sand.u32 %s146, 1
        %s2440 = smul.addr %s2439, 2
        %s2441 = scalar_lea.vmem [#allocation5], %s2440
        // Predicated region
        $region60: #{tpu_custom_call.1} parent=54 // pred_check
          %p2442 = pneg %p130
        $region61: #{tpu_custom_call.1} parent=54 // pred_check_branch
          %2444 = sbr.rel (%p2442) target = $region63
        $region62: #{tpu_custom_call.1} parent=54 // pred_region
          %s2445 = smul.u32 2, %s23
          %s2447 = ssub.s32 1024, 1024
          %2448 = vsyncadd %s2433, %s2447
          %s2449 = smul.addr %s2445, 128
          %s2450 = scalar_lea.hbm %s4, %s2449
          %s2451 = sshll.u32 %s2436, 4
          %s2452 = int_to_ptr.vmem [resolvable:$true] %s2451
          %2457 = dma.vmem_to_hbm [thread:$0]  %s2452, 1024, %s2450, %s2433, 256, 512, 16
        $region63: #{tpu_custom_call.1} parent=54 // pred_fallthru
          _
        // Predicated region
        $region64: #{tpu_custom_call.1} parent=54 // pred_check
          %p2458 = pneg %p156
        $region65: #{tpu_custom_call.1} parent=54 // pred_check_branch
          %2460 = sbr.rel (%p2458) target = $region67
        $region66: #{tpu_custom_call.1} parent=54 // pred_region
          %s2462 = ssub.s32 32, 32
          %2463 = vsyncadd %s2438, %s2462
          %s2464 = smul.addr %s23, 2
          %s2465 = smul.addr %s2464, 16
          %s2466 = scalar_lea.hbm %s5, %s2465
          %s2468 = sshll.u32 %s2441, 4
          %s2469 = int_to_ptr.vmem [resolvable:$true] %s2468
          %2471 = dma.vmem_to_hbm [thread:$0]  %s2469, 32, %s2466, %s2438
        $region67: #{tpu_custom_call.1} parent=54 // pred_fallthru
          _
      $region55: #{tpu_custom_call.1} parent=5 // pred_fallthru
        _
      %p2472 = scmp.le.s32.totalorder 2, %s18
      // Predicated region
      $region68: #{tpu_custom_call.1} parent=5 // pred_check
        %p2473 = pneg %p2472
      $region69: #{tpu_custom_call.1} parent=5 // pred_check_branch
        %2475 = sbr.rel (%p2473) target = $region71
      $region70: #{tpu_custom_call.1} parent=5 // pred_region
        %s2476 = ssub.s32 %s18, 2
        // Predicated region
        $region72: #{tpu_custom_call.1} parent=70 // pred_check
          %p2477 = pneg %p136
        $region73: #{tpu_custom_call.1} parent=70 // pred_check_branch
          %2479 = sbr.rel (%p2477) target = $region75
        $region74: #{tpu_custom_call.1} parent=70 // pred_region
          %s2480 = sand.u32 %s121, 1
          %s2481 = scalar_lea.sflag [#allocation4], %s2480
          %s2482 = sand.u32 %s121, 1
          %s2483 = smul.addr %s2482, 64
          %s2484 = scalar_lea.vmem [#allocation3], %s2483
          %2485 = dma.done %s2481, 1024
        $region75: #{tpu_custom_call.1} parent=70 // pred_fallthru
          _
        // Predicated region
        $region76: #{tpu_custom_call.1} parent=70 // pred_check
          %p2486 = pneg %p162
        $region77: #{tpu_custom_call.1} parent=70 // pred_check_branch
          %2488 = sbr.rel (%p2486) target = $region79
        $region78: #{tpu_custom_call.1} parent=70 // pred_region
          %s2489 = sand.u32 %s147, 1
          %s2490 = scalar_lea.sflag [#allocation6], %s2489
          %s2491 = sand.u32 %s147, 1
          %s2492 = smul.addr %s2491, 2
          %s2493 = scalar_lea.vmem [#allocation5], %s2492
          %2494 = dma.done %s2490, 32
        $region79: #{tpu_custom_call.1} parent=70 // pred_fallthru
          _
      $region71: #{tpu_custom_call.1} parent=5 // pred_fallthru
        _
    $region6: #{tpu_custom_call.1} parent=1 // loop_footer
      %s22 = sadd.s32 1, %s18
    $region7: #{tpu_custom_call.1} parent=1 // loop_footer_branch
      %17 = sbr.rel target = $region3
    $region8: #{tpu_custom_call.1} parent=1 // loop_exit
      _
    %2495 = vsyncpa [#allocation4], 1
    %s2496 = scalar_lea.sflag [#allocation4], 1
    %2497 = vsyncpa %s2496, 1
    %2498 = vsyncpa [#allocation6], 1
    %s2499 = scalar_lea.sflag [#allocation6], 1
    %2500 = vsyncpa %s2499, 1

</llo_original>
